<compile_context>
chip_gen: v5e
topology: v5e:2x2
jax: 0.10.0
libtpu: 0.0.40
codegen_flags: <defaults>
</compile_context>

<pallas_src>
import functools

import jax
import jax.numpy as jnp
from jax import lax
from jax.experimental import pallas as pl
from jax.experimental.pallas import tpu as pltpu

KSIZE = 7
PAD = KSIZE // 2  # padding = kernel_size // 2  -> "same" conv


def _round_up(x, m):
    return (x + m - 1) // m * m


def spatial_attention_kernel(w_ref, col_ref, x_ref, o_ref,
                             avg_pad_ref, max_pad_ref, *, width, base):
    """One batch element per grid step.

    w_ref:        SMEM (2*49,) f32     conv weight, [in_ch, kh, kw] flattened
    col_ref:      VMEM (1, HW) int32   flat-pixel column index (p % W)
    x_ref:        VMEM (1, C, HW)      lane-dense input block
    o_ref:        VMEM (1, C, HW)      lane-dense output block
    avg/max_pad:  VMEM (1, L) f32      flat zero-padded channel-mean / -max maps
    """
    x = x_ref[0]                                   # (C, HW), native dtype
    hw = x.shape[1]
    halo = PAD * width + PAD                       # max |lane shift| of a tap

    # Channel-wise reductions (PyTorch dim=1) directly in the lane-dense layout.
    avg = jnp.mean(x, axis=0, keepdims=True, dtype=jnp.float32)   # (1, HW) f32
    mx = jnp.max(x, axis=0, keepdims=True).astype(jnp.float32)    # (1, HW) f32

    # Zero only the halo borders; the interior is fully overwritten every step.
    zeros_l = jnp.zeros((1, base), jnp.float32)
    zeros_r = jnp.zeros((1, halo), jnp.float32)
    avg_pad_ref[:, pl.ds(0, base)] = zeros_l
    max_pad_ref[:, pl.ds(0, base)] = zeros_l
    avg_pad_ref[:, pl.ds(base + hw, halo)] = zeros_r
    max_pad_ref[:, pl.ds(base + hw, halo)] = zeros_r
    avg_pad_ref[:, pl.ds(base, hw)] = avg          # 128-lane-aligned interior store
    max_pad_ref[:, pl.ds(base, hw)] = mx

    col = col_ref[...]                             # (1, HW) int32, = p % W

    # 7x7 "same" conv over the 2-channel [avg, max] stack, fully unrolled.
    # In the flat layout a (dh, dw) tap is a static lane shift of dh*W + dw on
    # the padded map: row under/overflow lands in the zero halo, and column
    # overflow is removed once per dw with a single select over the whole
    # kh-accumulated partial.
    acc = jnp.zeros((1, hw), jnp.float32)
    for kw in range(KSIZE):
        dw = kw - PAD
        partial = jnp.zeros((1, hw), jnp.float32)
        for kh in range(KSIZE):
            dh = kh - PAD
            start = base + dh * width + dw                     # static offset
            w_avg = w_ref[kh * KSIZE + kw]                     # in-channel 0 (avg)
            w_max = w_ref[KSIZE * KSIZE + kh * KSIZE + kw]     # in-channel 1 (max)
            partial = (partial
                       + avg_pad_ref[:, pl.ds(start, hw)] * w_avg
                       + max_pad_ref[:, pl.ds(start, hw)] * w_max)
        if dw == 0:
            acc = acc + partial
        else:
            valid = (col >= -dw) & (col < width - dw)
            acc = acc + jnp.where(valid, partial, 0.0)

    att = jax.nn.sigmoid(acc)                      # (1, HW) f32 attention map
    o_ref[0] = (x * att).astype(o_ref.dtype)       # broadcast over channels


def spatial_attention(x, w):
    """x: (B, C, H, W); w: (1, 2, KSIZE, KSIZE) PyTorch OIHW conv weight (no bias)."""
    B, C, H, W = x.shape
    HW = H * W

    x_flat = x.reshape(B, C, HW)                        # lane-dense view (free reshape)
    w_flat = w.reshape(-1).astype(jnp.float32)          # (2 * KSIZE * KSIZE,)
    col_ids = (jnp.arange(HW, dtype=jnp.int32) % W).reshape(1, HW)

    halo = PAD * W + PAD
    base = _round_up(halo, 128)                         # 128-aligned interior offset
    pad_len = base + HW + halo                          # flat padded-map length

    block_bytes = C * HW * x.dtype.itemsize
    # double-buffered in + out blocks, two padded scratch maps, col ids, slack
    need = 4 * block_bytes + 2 * pad_len * 4 + 2 * HW * 4 + (2 << 20)
    vmem_limit = int(min(max(need, 16 << 20), 64 << 20))

    kernel = functools.partial(spatial_attention_kernel, width=W, base=base)

    out_flat = pl.pallas_call(
        kernel,
        out_shape=jax.ShapeDtypeStruct((B, C, HW), x.dtype),
        grid_spec=pltpu.PrefetchScalarGridSpec(
            num_scalar_prefetch=0,
            grid=(B,),
            in_specs=[
                pl.BlockSpec(memory_space=pltpu.MemorySpace.SMEM),    # conv weights
                pl.BlockSpec((1, HW), lambda b: (0, 0)),              # column ids
                pl.BlockSpec((1, C, HW), lambda b: (b, 0, 0)),        # x (lane-dense)
            ],
            out_specs=pl.BlockSpec((1, C, HW), lambda b: (b, 0, 0)),
            scratch_shapes=[
                pltpu.VMEM((1, pad_len), jnp.float32),
                pltpu.VMEM((1, pad_len), jnp.float32),
            ],
        ),
        compiler_params=pltpu.CompilerParams(
            dimension_semantics=("parallel",),
            vmem_limit_bytes=vmem_limit,
        ),
    )(w_flat, col_ids, x_flat)

    return out_flat.reshape(B, C, H, W)


def spatial_attention_reference(x, w):
    """Pure-JAX reference matching the PyTorch forward exactly."""
    avg = jnp.mean(x, axis=1, keepdims=True)
    mx = jnp.max(x, axis=1, keepdims=True)
    cat = jnp.concatenate([avg, mx], axis=1)
    conv = lax.conv_general_dilated(
        cat, w, window_strides=(1, 1),
        padding=((PAD, PAD), (PAD, PAD)),
        dimension_numbers=("NCHW", "OIHW", "NCHW"))
    return jax.nn.sigmoid(conv) * x


if __name__ == "__main__":
    key = jax.random.PRNGKey(0)
    kx, kw = jax.random.split(key)

    B, C, H, W = 2, 4, 16, 16
    x = jax.random.normal(kx, (B, C, H, W), dtype=jnp.float32)

    # Conv weight init (shape from nn.Conv2d(2, 1, 7, bias=False)):
    # uniform in [-bound, bound] with bound = 1/sqrt(fan_in), like PyTorch default.
    fan_in = 2 * KSIZE * KSIZE
    bound = 1.0 / (fan_in ** 0.5)
    w = jax.random.uniform(kw, (1, 2, KSIZE, KSIZE), dtype=jnp.float32,
                           minval=-bound, maxval=bound)

    out = spatial_attention(x, w)
    out = jax.block_until_ready(out)

    ref = spatial_attention_reference(x, w)
    assert out.shape == (B, C, H, W)
    assert jnp.allclose(out, ref, rtol=1e-5, atol=1e-5), (
        float(jnp.max(jnp.abs(out - ref))))

    print("KERNEL_OK")
</pallas_src>

<mosaic_0001>
module attributes {stable_mosaic.version = 11 : i64} {
  func.func @spatial_attention_kernel(%arg0: i32, %arg1: memref<98xf32, #tpu.memory_space<smem>>, %arg2: memref<1x256xi32, #tpu.memory_space<vmem>>, %arg3: memref<1x4x256xf32, #tpu.memory_space<vmem>>, %arg4: memref<1x4x256xf32, #tpu.memory_space<vmem>>, %arg5: memref<1x435xf32, #tpu.memory_space<vmem>>, %arg6: memref<1x435xf32, #tpu.memory_space<vmem>>) attributes {dimension_semantics = [#tpu.dimension_semantics<parallel>], iteration_bounds = array<i64: 2>, scalar_prefetch = 0 : i64, scratch_operands = 2 : i64, tpu.core_type = #tpu.core_type<tc>, window_params = [{transform_indices = @transform_0, window_bounds = array<i64: 98>}, {pipeline_mode = #tpu.pipeline_mode<synchronous>, transform_indices = @transform_1, window_bounds = array<i64: 1, 256>}, {transform_indices = @transform_2, window_bounds = array<i64: 1, 4, 256>}, {transform_indices = @transform_3, window_bounds = array<i64: 1, 4, 256>}]} {
    %c0 = arith.constant 0 : index
    %c0_0 = arith.constant 0 : index
    %c0_1 = arith.constant 0 : index
    %0 = vector.load %arg3[%c0, %c0_0, %c0_1] : memref<1x4x256xf32, #tpu.memory_space<vmem>>, vector<1x4x256xf32>
    %1 = vector.shape_cast %0 : vector<1x4x256xf32> to vector<4x256xf32>
    %cst = arith.constant dense<0.000000e+00> : vector<256xf32>
    %2 = vector.multi_reduction <add>, %1, %cst [0] : vector<4x256xf32> to vector<256xf32>
    %3 = vector.shape_cast %2 : vector<256xf32> to vector<1x256xf32>
    %cst_2 = arith.constant 4.000000e+00 : f32
    %4 = vector.broadcast %cst_2 : f32 to vector<1x256xf32>
    %5 = arith.divf %3, %4 : vector<1x256xf32>
    %cst_3 = arith.constant dense<0xFF800000> : vector<256xf32>
    %6 = vector.multi_reduction <maximumf>, %1, %cst_3 [0] : vector<4x256xf32> to vector<256xf32>
    %7 = vector.shape_cast %6 : vector<256xf32> to vector<1x256xf32>
    %cst_4 = arith.constant 0.000000e+00 : f32
    %8 = vector.broadcast %cst_4 : f32 to vector<1x128xf32>
    %cst_5 = arith.constant 0.000000e+00 : f32
    %9 = vector.broadcast %cst_5 : f32 to vector<1x51xf32>
    %c0_6 = arith.constant 0 : index
    %c0_7 = arith.constant 0 : index
    %10 = vector.load %arg5[%c0_6, %c0_7] : memref<1x435xf32, #tpu.memory_space<vmem>>, vector<1x128xf32>
    tpu.vector_store %arg5[%c0_6, %c0_7], %8 {strides = array<i32>} : memref<1x435xf32, #tpu.memory_space<vmem>>, vector<1x128xf32>,
    %c0_8 = arith.constant 0 : index
    %c0_9 = arith.constant 0 : index
    %11 = vector.load %arg6[%c0_8, %c0_9] : memref<1x435xf32, #tpu.memory_space<vmem>>, vector<1x128xf32>
    tpu.vector_store %arg6[%c0_8, %c0_9], %8 {strides = array<i32>} : memref<1x435xf32, #tpu.memory_space<vmem>>, vector<1x128xf32>,
    %c0_10 = arith.constant 0 : index
    %c384 = arith.constant 384 : index
    %12 = vector.load %arg5[%c0_10, %c384] : memref<1x435xf32, #tpu.memory_space<vmem>>, vector<1x51xf32>
    tpu.vector_store %arg5[%c0_10, %c384], %9 {strides = array<i32>} : memref<1x435xf32, #tpu.memory_space<vmem>>, vector<1x51xf32>,
    %c0_11 = arith.constant 0 : index
    %c384_12 = arith.constant 384 : index
    %13 = vector.load %arg6[%c0_11, %c384_12] : memref<1x435xf32, #tpu.memory_space<vmem>>, vector<1x51xf32>
    tpu.vector_store %arg6[%c0_11, %c384_12], %9 {strides = array<i32>} : memref<1x435xf32, #tpu.memory_space<vmem>>, vector<1x51xf32>,
    %c0_13 = arith.constant 0 : index
    %c128 = arith.constant 128 : index
    %14 = vector.load %arg5[%c0_13, %c128] : memref<1x435xf32, #tpu.memory_space<vmem>>, vector<1x256xf32>
    tpu.vector_store %arg5[%c0_13, %c128], %5 {strides = array<i32>} : memref<1x435xf32, #tpu.memory_space<vmem>>, vector<1x256xf32>,
    %c0_14 = arith.constant 0 : index
    %c128_15 = arith.constant 128 : index
    %15 = vector.load %arg6[%c0_14, %c128_15] : memref<1x435xf32, #tpu.memory_space<vmem>>, vector<1x256xf32>
    tpu.vector_store %arg6[%c0_14, %c128_15], %7 {strides = array<i32>} : memref<1x435xf32, #tpu.memory_space<vmem>>, vector<1x256xf32>,
    %c0_16 = arith.constant 0 : index
    %c0_17 = arith.constant 0 : index
    %16 = vector.load %arg2[%c0_16, %c0_17] : memref<1x256xi32, #tpu.memory_space<vmem>>, vector<1x256xi32>
    %cst_18 = arith.constant 0.000000e+00 : f32
    %17 = vector.broadcast %cst_18 : f32 to vector<1x256xf32>
    %cst_19 = arith.constant 0.000000e+00 : f32
    %18 = vector.broadcast %cst_19 : f32 to vector<1x256xf32>
    %c0_20 = arith.constant 0 : index
    %19 = memref.load %arg1[%c0_20] : memref<98xf32, #tpu.memory_space<smem>>
    %c49 = arith.constant 49 : index
    %20 = memref.load %arg1[%c49] : memref<98xf32, #tpu.memory_space<smem>>
    %c0_21 = arith.constant 0 : index
    %c77 = arith.constant 77 : index
    %21 = vector.load %arg5[%c0_21, %c77] : memref<1x435xf32, #tpu.memory_space<vmem>>, vector<1x256xf32>
    %22 = vector.broadcast %19 : f32 to vector<1x256xf32>
    %23 = arith.mulf %21, %22 : vector<1x256xf32>
    %24 = arith.addf %18, %23 : vector<1x256xf32>
    %c0_22 = arith.constant 0 : index
    %c77_23 = arith.constant 77 : index
    %25 = vector.load %arg6[%c0_22, %c77_23] : memref<1x435xf32, #tpu.memory_space<vmem>>, vector<1x256xf32>
    %26 = vector.broadcast %20 : f32 to vector<1x256xf32>
    %27 = arith.mulf %25, %26 : vector<1x256xf32>
    %28 = arith.addf %24, %27 : vector<1x256xf32>
    %c7 = arith.constant 7 : index
    %29 = memref.load %arg1[%c7] : memref<98xf32, #tpu.memory_space<smem>>
    %c56 = arith.constant 56 : index
    %30 = memref.load %arg1[%c56] : memref<98xf32, #tpu.memory_space<smem>>
    %c0_24 = arith.constant 0 : index
    %c93 = arith.constant 93 : index
    %31 = vector.load %arg5[%c0_24, %c93] : memref<1x435xf32, #tpu.memory_space<vmem>>, vector<1x256xf32>
    %32 = vector.broadcast %29 : f32 to vector<1x256xf32>
    %33 = arith.mulf %31, %32 : vector<1x256xf32>
    %34 = arith.addf %28, %33 : vector<1x256xf32>
    %c0_25 = arith.constant 0 : index
    %c93_26 = arith.constant 93 : index
    %35 = vector.load %arg6[%c0_25, %c93_26] : memref<1x435xf32, #tpu.memory_space<vmem>>, vector<1x256xf32>
    %36 = vector.broadcast %30 : f32 to vector<1x256xf32>
    %37 = arith.mulf %35, %36 : vector<1x256xf32>
    %38 = arith.addf %34, %37 : vector<1x256xf32>
    %c14 = arith.constant 14 : index
    %39 = memref.load %arg1[%c14] : memref<98xf32, #tpu.memory_space<smem>>
    %c63 = arith.constant 63 : index
    %40 = memref.load %arg1[%c63] : memref<98xf32, #tpu.memory_space<smem>>
    %c0_27 = arith.constant 0 : index
    %c109 = arith.constant 109 : index
    %41 = vector.load %arg5[%c0_27, %c109] : memref<1x435xf32, #tpu.memory_space<vmem>>, vector<1x256xf32>
    %42 = vector.broadcast %39 : f32 to vector<1x256xf32>
    %43 = arith.mulf %41, %42 : vector<1x256xf32>
    %44 = arith.addf %38, %43 : vector<1x256xf32>
    %c0_28 = arith.constant 0 : index
    %c109_29 = arith.constant 109 : index
    %45 = vector.load %arg6[%c0_28, %c109_29] : memref<1x435xf32, #tpu.memory_space<vmem>>, vector<1x256xf32>
    %46 = vector.broadcast %40 : f32 to vector<1x256xf32>
    %47 = arith.mulf %45, %46 : vector<1x256xf32>
    %48 = arith.addf %44, %47 : vector<1x256xf32>
    %c21 = arith.constant 21 : index
    %49 = memref.load %arg1[%c21] : memref<98xf32, #tpu.memory_space<smem>>
    %c70 = arith.constant 70 : index
    %50 = memref.load %arg1[%c70] : memref<98xf32, #tpu.memory_space<smem>>
    %c0_30 = arith.constant 0 : index
    %c125 = arith.constant 125 : index
    %51 = vector.load %arg5[%c0_30, %c125] : memref<1x435xf32, #tpu.memory_space<vmem>>, vector<1x256xf32>
    %52 = vector.broadcast %49 : f32 to vector<1x256xf32>
    %53 = arith.mulf %51, %52 : vector<1x256xf32>
    %54 = arith.addf %48, %53 : vector<1x256xf32>
    %c0_31 = arith.constant 0 : index
    %c125_32 = arith.constant 125 : index
    %55 = vector.load %arg6[%c0_31, %c125_32] : memref<1x435xf32, #tpu.memory_space<vmem>>, vector<1x256xf32>
    %56 = vector.broadcast %50 : f32 to vector<1x256xf32>
    %57 = arith.mulf %55, %56 : vector<1x256xf32>
    %58 = arith.addf %54, %57 : vector<1x256xf32>
    %c28 = arith.constant 28 : index
    %59 = memref.load %arg1[%c28] : memref<98xf32, #tpu.memory_space<smem>>
    %c77_33 = arith.constant 77 : index
    %60 = memref.load %arg1[%c77_33] : memref<98xf32, #tpu.memory_space<smem>>
    %c0_34 = arith.constant 0 : index
    %c141 = arith.constant 141 : index
    %61 = vector.load %arg5[%c0_34, %c141] : memref<1x435xf32, #tpu.memory_space<vmem>>, vector<1x256xf32>
    %62 = vector.broadcast %59 : f32 to vector<1x256xf32>
    %63 = arith.mulf %61, %62 : vector<1x256xf32>
    %64 = arith.addf %58, %63 : vector<1x256xf32>
    %c0_35 = arith.constant 0 : index
    %c141_36 = arith.constant 141 : index
    %65 = vector.load %arg6[%c0_35, %c141_36] : memref<1x435xf32, #tpu.memory_space<vmem>>, vector<1x256xf32>
    %66 = vector.broadcast %60 : f32 to vector<1x256xf32>
    %67 = arith.mulf %65, %66 : vector<1x256xf32>
    %68 = arith.addf %64, %67 : vector<1x256xf32>
    %c35 = arith.constant 35 : index
    %69 = memref.load %arg1[%c35] : memref<98xf32, #tpu.memory_space<smem>>
    %c84 = arith.constant 84 : index
    %70 = memref.load %arg1[%c84] : memref<98xf32, #tpu.memory_space<smem>>
    %c0_37 = arith.constant 0 : index
    %c157 = arith.constant 157 : index
    %71 = vector.load %arg5[%c0_37, %c157] : memref<1x435xf32, #tpu.memory_space<vmem>>, vector<1x256xf32>
    %72 = vector.broadcast %69 : f32 to vector<1x256xf32>
    %73 = arith.mulf %71, %72 : vector<1x256xf32>
    %74 = arith.addf %68, %73 : vector<1x256xf32>
    %c0_38 = arith.constant 0 : index
    %c157_39 = arith.constant 157 : index
    %75 = vector.load %arg6[%c0_38, %c157_39] : memref<1x435xf32, #tpu.memory_space<vmem>>, vector<1x256xf32>
    %76 = vector.broadcast %70 : f32 to vector<1x256xf32>
    %77 = arith.mulf %75, %76 : vector<1x256xf32>
    %78 = arith.addf %74, %77 : vector<1x256xf32>
    %c42 = arith.constant 42 : index
    %79 = memref.load %arg1[%c42] : memref<98xf32, #tpu.memory_space<smem>>
    %c91 = arith.constant 91 : index
    %80 = memref.load %arg1[%c91] : memref<98xf32, #tpu.memory_space<smem>>
    %c0_40 = arith.constant 0 : index
    %c173 = arith.constant 173 : index
    %81 = vector.load %arg5[%c0_40, %c173] : memref<1x435xf32, #tpu.memory_space<vmem>>, vector<1x256xf32>
    %82 = vector.broadcast %79 : f32 to vector<1x256xf32>
    %83 = arith.mulf %81, %82 : vector<1x256xf32>
    %84 = arith.addf %78, %83 : vector<1x256xf32>
    %c0_41 = arith.constant 0 : index
    %c173_42 = arith.constant 173 : index
    %85 = vector.load %arg6[%c0_41, %c173_42] : memref<1x435xf32, #tpu.memory_space<vmem>>, vector<1x256xf32>
    %86 = vector.broadcast %80 : f32 to vector<1x256xf32>
    %87 = arith.mulf %85, %86 : vector<1x256xf32>
    %88 = arith.addf %84, %87 : vector<1x256xf32>
    %c3_i32 = arith.constant 3 : i32
    %89 = vector.broadcast %c3_i32 : i32 to vector<1x256xi32>
    %90 = arith.cmpi sge, %16, %89 : vector<1x256xi32>
    %c19_i32 = arith.constant 19 : i32
    %91 = vector.broadcast %c19_i32 : i32 to vector<1x256xi32>
    %92 = arith.cmpi slt, %16, %91 : vector<1x256xi32>
    %93 = arith.andi %90, %92 : vector<1x256xi1>
    %cst_43 = arith.constant 0.000000e+00 : f32
    %94 = vector.broadcast %cst_43 : f32 to vector<1x256xf32>
    %95 = arith.select %93, %88, %94 : vector<1x256xi1>, vector<1x256xf32>
    %96 = arith.addf %17, %95 : vector<1x256xf32>
    %cst_44 = arith.constant 0.000000e+00 : f32
    %97 = vector.broadcast %cst_44 : f32 to vector<1x256xf32>
    %c1 = arith.constant 1 : index
    %98 = memref.load %arg1[%c1] : memref<98xf32, #tpu.memory_space<smem>>
    %c50 = arith.constant 50 : index
    %99 = memref.load %arg1[%c50] : memref<98xf32, #tpu.memory_space<smem>>
    %c0_45 = arith.constant 0 : index
    %c78 = arith.constant 78 : index
    %100 = vector.load %arg5[%c0_45, %c78] : memref<1x435xf32, #tpu.memory_space<vmem>>, vector<1x256xf32>
    %101 = vector.broadcast %98 : f32 to vector<1x256xf32>
    %102 = arith.mulf %100, %101 : vector<1x256xf32>
    %103 = arith.addf %97, %102 : vector<1x256xf32>
    %c0_46 = arith.constant 0 : index
    %c78_47 = arith.constant 78 : index
    %104 = vector.load %arg6[%c0_46, %c78_47] : memref<1x435xf32, #tpu.memory_space<vmem>>, vector<1x256xf32>
    %105 = vector.broadcast %99 : f32 to vector<1x256xf32>
    %106 = arith.mulf %104, %105 : vector<1x256xf32>
    %107 = arith.addf %103, %106 : vector<1x256xf32>
    %c8 = arith.constant 8 : index
    %108 = memref.load %arg1[%c8] : memref<98xf32, #tpu.memory_space<smem>>
    %c57 = arith.constant 57 : index
    %109 = memref.load %arg1[%c57] : memref<98xf32, #tpu.memory_space<smem>>
    %c0_48 = arith.constant 0 : index
    %c94 = arith.constant 94 : index
    %110 = vector.load %arg5[%c0_48, %c94] : memref<1x435xf32, #tpu.memory_space<vmem>>, vector<1x256xf32>
    %111 = vector.broadcast %108 : f32 to vector<1x256xf32>
    %112 = arith.mulf %110, %111 : vector<1x256xf32>
    %113 = arith.addf %107, %112 : vector<1x256xf32>
    %c0_49 = arith.constant 0 : index
    %c94_50 = arith.constant 94 : index
    %114 = vector.load %arg6[%c0_49, %c94_50] : memref<1x435xf32, #tpu.memory_space<vmem>>, vector<1x256xf32>
    %115 = vector.broadcast %109 : f32 to vector<1x256xf32>
    %116 = arith.mulf %114, %115 : vector<1x256xf32>
    %117 = arith.addf %113, %116 : vector<1x256xf32>
    %c15 = arith.constant 15 : index
    %118 = memref.load %arg1[%c15] : memref<98xf32, #tpu.memory_space<smem>>
    %c64 = arith.constant 64 : index
    %119 = memref.load %arg1[%c64] : memref<98xf32, #tpu.memory_space<smem>>
    %c0_51 = arith.constant 0 : index
    %c110 = arith.constant 110 : index
    %120 = vector.load %arg5[%c0_51, %c110] : memref<1x435xf32, #tpu.memory_space<vmem>>, vector<1x256xf32>
    %121 = vector.broadcast %118 : f32 to vector<1x256xf32>
    %122 = arith.mulf %120, %121 : vector<1x256xf32>
    %123 = arith.addf %117, %122 : vector<1x256xf32>
    %c0_52 = arith.constant 0 : index
    %c110_53 = arith.constant 110 : index
    %124 = vector.load %arg6[%c0_52, %c110_53] : memref<1x435xf32, #tpu.memory_space<vmem>>, vector<1x256xf32>
    %125 = vector.broadcast %119 : f32 to vector<1x256xf32>
    %126 = arith.mulf %124, %125 : vector<1x256xf32>
    %127 = arith.addf %123, %126 : vector<1x256xf32>
    %c22 = arith.constant 22 : index
    %128 = memref.load %arg1[%c22] : memref<98xf32, #tpu.memory_space<smem>>
    %c71 = arith.constant 71 : index
    %129 = memref.load %arg1[%c71] : memref<98xf32, #tpu.memory_space<smem>>
    %c0_54 = arith.constant 0 : index
    %c126 = arith.constant 126 : index
    %130 = vector.load %arg5[%c0_54, %c126] : memref<1x435xf32, #tpu.memory_space<vmem>>, vector<1x256xf32>
    %131 = vector.broadcast %128 : f32 to vector<1x256xf32>
    %132 = arith.mulf %130, %131 : vector<1x256xf32>
    %133 = arith.addf %127, %132 : vector<1x256xf32>
    %c0_55 = arith.constant 0 : index
    %c126_56 = arith.constant 126 : index
    %134 = vector.load %arg6[%c0_55, %c126_56] : memref<1x435xf32, #tpu.memory_space<vmem>>, vector<1x256xf32>
    %135 = vector.broadcast %129 : f32 to vector<1x256xf32>
    %136 = arith.mulf %134, %135 : vector<1x256xf32>
    %137 = arith.addf %133, %136 : vector<1x256xf32>
    %c29 = arith.constant 29 : index
    %138 = memref.load %arg1[%c29] : memref<98xf32, #tpu.memory_space<smem>>
    %c78_57 = arith.constant 78 : index
    %139 = memref.load %arg1[%c78_57] : memref<98xf32, #tpu.memory_space<smem>>
    %c0_58 = arith.constant 0 : index
    %c142 = arith.constant 142 : index
    %140 = vector.load %arg5[%c0_58, %c142] : memref<1x435xf32, #tpu.memory_space<vmem>>, vector<1x256xf32>
    %141 = vector.broadcast %138 : f32 to vector<1x256xf32>
    %142 = arith.mulf %140, %141 : vector<1x256xf32>
    %143 = arith.addf %137, %142 : vector<1x256xf32>
    %c0_59 = arith.constant 0 : index
    %c142_60 = arith.constant 142 : index
    %144 = vector.load %arg6[%c0_59, %c142_60] : memref<1x435xf32, #tpu.memory_space<vmem>>, vector<1x256xf32>
    %145 = vector.broadcast %139 : f32 to vector<1x256xf32>
    %146 = arith.mulf %144, %145 : vector<1x256xf32>
    %147 = arith.addf %143, %146 : vector<1x256xf32>
    %c36 = arith.constant 36 : index
    %148 = memref.load %arg1[%c36] : memref<98xf32, #tpu.memory_space<smem>>
    %c85 = arith.constant 85 : index
    %149 = memref.load %arg1[%c85] : memref<98xf32, #tpu.memory_space<smem>>
    %c0_61 = arith.constant 0 : index
    %c158 = arith.constant 158 : index
    %150 = vector.load %arg5[%c0_61, %c158] : memref<1x435xf32, #tpu.memory_space<vmem>>, vector<1x256xf32>
    %151 = vector.broadcast %148 : f32 to vector<1x256xf32>
    %152 = arith.mulf %150, %151 : vector<1x256xf32>
    %153 = arith.addf %147, %152 : vector<1x256xf32>
    %c0_62 = arith.constant 0 : index
    %c158_63 = arith.constant 158 : index
    %154 = vector.load %arg6[%c0_62, %c158_63] : memref<1x435xf32, #tpu.memory_space<vmem>>, vector<1x256xf32>
    %155 = vector.broadcast %149 : f32 to vector<1x256xf32>
    %156 = arith.mulf %154, %155 : vector<1x256xf32>
    %157 = arith.addf %153, %156 : vector<1x256xf32>
    %c43 = arith.constant 43 : index
    %158 = memref.load %arg1[%c43] : memref<98xf32, #tpu.memory_space<smem>>
    %c92 = arith.constant 92 : index
    %159 = memref.load %arg1[%c92] : memref<98xf32, #tpu.memory_space<smem>>
    %c0_64 = arith.constant 0 : index
    %c174 = arith.constant 174 : index
    %160 = vector.load %arg5[%c0_64, %c174] : memref<1x435xf32, #tpu.memory_space<vmem>>, vector<1x256xf32>
    %161 = vector.broadcast %158 : f32 to vector<1x256xf32>
    %162 = arith.mulf %160, %161 : vector<1x256xf32>
    %163 = arith.addf %157, %162 : vector<1x256xf32>
    %c0_65 = arith.constant 0 : index
    %c174_66 = arith.constant 174 : index
    %164 = vector.load %arg6[%c0_65, %c174_66] : memref<1x435xf32, #tpu.memory_space<vmem>>, vector<1x256xf32>
    %165 = vector.broadcast %159 : f32 to vector<1x256xf32>
    %166 = arith.mulf %164, %165 : vector<1x256xf32>
    %167 = arith.addf %163, %166 : vector<1x256xf32>
    %c2_i32 = arith.constant 2 : i32
    %168 = vector.broadcast %c2_i32 : i32 to vector<1x256xi32>
    %169 = arith.cmpi sge, %16, %168 : vector<1x256xi32>
    %c18_i32 = arith.constant 18 : i32
    %170 = vector.broadcast %c18_i32 : i32 to vector<1x256xi32>
    %171 = arith.cmpi slt, %16, %170 : vector<1x256xi32>
    %172 = arith.andi %169, %171 : vector<1x256xi1>
    %cst_67 = arith.constant 0.000000e+00 : f32
    %173 = vector.broadcast %cst_67 : f32 to vector<1x256xf32>
    %174 = arith.select %172, %167, %173 : vector<1x256xi1>, vector<1x256xf32>
    %175 = arith.addf %96, %174 : vector<1x256xf32>
    %cst_68 = arith.constant 0.000000e+00 : f32
    %176 = vector.broadcast %cst_68 : f32 to vector<1x256xf32>
    %c2 = arith.constant 2 : index
    %177 = memref.load %arg1[%c2] : memref<98xf32, #tpu.memory_space<smem>>
    %c51 = arith.constant 51 : index
    %178 = memref.load %arg1[%c51] : memref<98xf32, #tpu.memory_space<smem>>
    %c0_69 = arith.constant 0 : index
    %c79 = arith.constant 79 : index
    %179 = vector.load %arg5[%c0_69, %c79] : memref<1x435xf32, #tpu.memory_space<vmem>>, vector<1x256xf32>
    %180 = vector.broadcast %177 : f32 to vector<1x256xf32>
    %181 = arith.mulf %179, %180 : vector<1x256xf32>
    %182 = arith.addf %176, %181 : vector<1x256xf32>
    %c0_70 = arith.constant 0 : index
    %c79_71 = arith.constant 79 : index
    %183 = vector.load %arg6[%c0_70, %c79_71] : memref<1x435xf32, #tpu.memory_space<vmem>>, vector<1x256xf32>
    %184 = vector.broadcast %178 : f32 to vector<1x256xf32>
    %185 = arith.mulf %183, %184 : vector<1x256xf32>
    %186 = arith.addf %182, %185 : vector<1x256xf32>
    %c9 = arith.constant 9 : index
    %187 = memref.load %arg1[%c9] : memref<98xf32, #tpu.memory_space<smem>>
    %c58 = arith.constant 58 : index
    %188 = memref.load %arg1[%c58] : memref<98xf32, #tpu.memory_space<smem>>
    %c0_72 = arith.constant 0 : index
    %c95 = arith.constant 95 : index
    %189 = vector.load %arg5[%c0_72, %c95] : memref<1x435xf32, #tpu.memory_space<vmem>>, vector<1x256xf32>
    %190 = vector.broadcast %187 : f32 to vector<1x256xf32>
    %191 = arith.mulf %189, %190 : vector<1x256xf32>
    %192 = arith.addf %186, %191 : vector<1x256xf32>
    %c0_73 = arith.constant 0 : index
    %c95_74 = arith.constant 95 : index
    %193 = vector.load %arg6[%c0_73, %c95_74] : memref<1x435xf32, #tpu.memory_space<vmem>>, vector<1x256xf32>
    %194 = vector.broadcast %188 : f32 to vector<1x256xf32>
    %195 = arith.mulf %193, %194 : vector<1x256xf32>
    %196 = arith.addf %192, %195 : vector<1x256xf32>
    %c16 = arith.constant 16 : index
    %197 = memref.load %arg1[%c16] : memref<98xf32, #tpu.memory_space<smem>>
    %c65 = arith.constant 65 : index
    %198 = memref.load %arg1[%c65] : memref<98xf32, #tpu.memory_space<smem>>
    %c0_75 = arith.constant 0 : index
    %c111 = arith.constant 111 : index
    %199 = vector.load %arg5[%c0_75, %c111] : memref<1x435xf32, #tpu.memory_space<vmem>>, vector<1x256xf32>
    %200 = vector.broadcast %197 : f32 to vector<1x256xf32>
    %201 = arith.mulf %199, %200 : vector<1x256xf32>
    %202 = arith.addf %196, %201 : vector<1x256xf32>
    %c0_76 = arith.constant 0 : index
    %c111_77 = arith.constant 111 : index
    %203 = vector.load %arg6[%c0_76, %c111_77] : memref<1x435xf32, #tpu.memory_space<vmem>>, vector<1x256xf32>
    %204 = vector.broadcast %198 : f32 to vector<1x256xf32>
    %205 = arith.mulf %203, %204 : vector<1x256xf32>
    %206 = arith.addf %202, %205 : vector<1x256xf32>
    %c23 = arith.constant 23 : index
    %207 = memref.load %arg1[%c23] : memref<98xf32, #tpu.memory_space<smem>>
    %c72 = arith.constant 72 : index
    %208 = memref.load %arg1[%c72] : memref<98xf32, #tpu.memory_space<smem>>
    %c0_78 = arith.constant 0 : index
    %c127 = arith.constant 127 : index
    %209 = vector.load %arg5[%c0_78, %c127] : memref<1x435xf32, #tpu.memory_space<vmem>>, vector<1x256xf32>
    %210 = vector.broadcast %207 : f32 to vector<1x256xf32>
    %211 = arith.mulf %209, %210 : vector<1x256xf32>
    %212 = arith.addf %206, %211 : vector<1x256xf32>
    %c0_79 = arith.constant 0 : index
    %c127_80 = arith.constant 127 : index
    %213 = vector.load %arg6[%c0_79, %c127_80] : memref<1x435xf32, #tpu.memory_space<vmem>>, vector<1x256xf32>
    %214 = vector.broadcast %208 : f32 to vector<1x256xf32>
    %215 = arith.mulf %213, %214 : vector<1x256xf32>
    %216 = arith.addf %212, %215 : vector<1x256xf32>
    %c30 = arith.constant 30 : index
    %217 = memref.load %arg1[%c30] : memref<98xf32, #tpu.memory_space<smem>>
    %c79_81 = arith.constant 79 : index
    %218 = memref.load %arg1[%c79_81] : memref<98xf32, #tpu.memory_space<smem>>
    %c0_82 = arith.constant 0 : index
    %c143 = arith.constant 143 : index
    %219 = vector.load %arg5[%c0_82, %c143] : memref<1x435xf32, #tpu.memory_space<vmem>>, vector<1x256xf32>
    %220 = vector.broadcast %217 : f32 to vector<1x256xf32>
    %221 = arith.mulf %219, %220 : vector<1x256xf32>
    %222 = arith.addf %216, %221 : vector<1x256xf32>
    %c0_83 = arith.constant 0 : index
    %c143_84 = arith.constant 143 : index
    %223 = vector.load %arg6[%c0_83, %c143_84] : memref<1x435xf32, #tpu.memory_space<vmem>>, vector<1x256xf32>
    %224 = vector.broadcast %218 : f32 to vector<1x256xf32>
    %225 = arith.mulf %223, %224 : vector<1x256xf32>
    %226 = arith.addf %222, %225 : vector<1x256xf32>
    %c37 = arith.constant 37 : index
    %227 = memref.load %arg1[%c37] : memref<98xf32, #tpu.memory_space<smem>>
    %c86 = arith.constant 86 : index
    %228 = memref.load %arg1[%c86] : memref<98xf32, #tpu.memory_space<smem>>
    %c0_85 = arith.constant 0 : index
    %c159 = arith.constant 159 : index
    %229 = vector.load %arg5[%c0_85, %c159] : memref<1x435xf32, #tpu.memory_space<vmem>>, vector<1x256xf32>
    %230 = vector.broadcast %227 : f32 to vector<1x256xf32>
    %231 = arith.mulf %229, %230 : vector<1x256xf32>
    %232 = arith.addf %226, %231 : vector<1x256xf32>
    %c0_86 = arith.constant 0 : index
    %c159_87 = arith.constant 159 : index
    %233 = vector.load %arg6[%c0_86, %c159_87] : memref<1x435xf32, #tpu.memory_space<vmem>>, vector<1x256xf32>
    %234 = vector.broadcast %228 : f32 to vector<1x256xf32>
    %235 = arith.mulf %233, %234 : vector<1x256xf32>
    %236 = arith.addf %232, %235 : vector<1x256xf32>
    %c44 = arith.constant 44 : index
    %237 = memref.load %arg1[%c44] : memref<98xf32, #tpu.memory_space<smem>>
    %c93_88 = arith.constant 93 : index
    %238 = memref.load %arg1[%c93_88] : memref<98xf32, #tpu.memory_space<smem>>
    %c0_89 = arith.constant 0 : index
    %c175 = arith.constant 175 : index
    %239 = vector.load %arg5[%c0_89, %c175] : memref<1x435xf32, #tpu.memory_space<vmem>>, vector<1x256xf32>
    %240 = vector.broadcast %237 : f32 to vector<1x256xf32>
    %241 = arith.mulf %239, %240 : vector<1x256xf32>
    %242 = arith.addf %236, %241 : vector<1x256xf32>
    %c0_90 = arith.constant 0 : index
    %c175_91 = arith.constant 175 : index
    %243 = vector.load %arg6[%c0_90, %c175_91] : memref<1x435xf32, #tpu.memory_space<vmem>>, vector<1x256xf32>
    %244 = vector.broadcast %238 : f32 to vector<1x256xf32>
    %245 = arith.mulf %243, %244 : vector<1x256xf32>
    %246 = arith.addf %242, %245 : vector<1x256xf32>
    %c1_i32 = arith.constant 1 : i32
    %247 = vector.broadcast %c1_i32 : i32 to vector<1x256xi32>
    %248 = arith.cmpi sge, %16, %247 : vector<1x256xi32>
    %c17_i32 = arith.constant 17 : i32
    %249 = vector.broadcast %c17_i32 : i32 to vector<1x256xi32>
    %250 = arith.cmpi slt, %16, %249 : vector<1x256xi32>
    %251 = arith.andi %248, %250 : vector<1x256xi1>
    %cst_92 = arith.constant 0.000000e+00 : f32
    %252 = vector.broadcast %cst_92 : f32 to vector<1x256xf32>
    %253 = arith.select %251, %246, %252 : vector<1x256xi1>, vector<1x256xf32>
    %254 = arith.addf %175, %253 : vector<1x256xf32>
    %cst_93 = arith.constant 0.000000e+00 : f32
    %255 = vector.broadcast %cst_93 : f32 to vector<1x256xf32>
    %c3 = arith.constant 3 : index
    %256 = memref.load %arg1[%c3] : memref<98xf32, #tpu.memory_space<smem>>
    %c52 = arith.constant 52 : index
    %257 = memref.load %arg1[%c52] : memref<98xf32, #tpu.memory_space<smem>>
    %c0_94 = arith.constant 0 : index
    %c80 = arith.constant 80 : index
    %258 = vector.load %arg5[%c0_94, %c80] : memref<1x435xf32, #tpu.memory_space<vmem>>, vector<1x256xf32>
    %259 = vector.broadcast %256 : f32 to vector<1x256xf32>
    %260 = arith.mulf %258, %259 : vector<1x256xf32>
    %261 = arith.addf %255, %260 : vector<1x256xf32>
    %c0_95 = arith.constant 0 : index
    %c80_96 = arith.constant 80 : index
    %262 = vector.load %arg6[%c0_95, %c80_96] : memref<1x435xf32, #tpu.memory_space<vmem>>, vector<1x256xf32>
    %263 = vector.broadcast %257 : f32 to vector<1x256xf32>
    %264 = arith.mulf %262, %263 : vector<1x256xf32>
    %265 = arith.addf %261, %264 : vector<1x256xf32>
    %c10 = arith.constant 10 : index
    %266 = memref.load %arg1[%c10] : memref<98xf32, #tpu.memory_space<smem>>
    %c59 = arith.constant 59 : index
    %267 = memref.load %arg1[%c59] : memref<98xf32, #tpu.memory_space<smem>>
    %c0_97 = arith.constant 0 : index
    %c96 = arith.constant 96 : index
    %268 = vector.load %arg5[%c0_97, %c96] : memref<1x435xf32, #tpu.memory_space<vmem>>, vector<1x256xf32>
    %269 = vector.broadcast %266 : f32 to vector<1x256xf32>
    %270 = arith.mulf %268, %269 : vector<1x256xf32>
    %271 = arith.addf %265, %270 : vector<1x256xf32>
    %c0_98 = arith.constant 0 : index
    %c96_99 = arith.constant 96 : index
    %272 = vector.load %arg6[%c0_98, %c96_99] : memref<1x435xf32, #tpu.memory_space<vmem>>, vector<1x256xf32>
    %273 = vector.broadcast %267 : f32 to vector<1x256xf32>
    %274 = arith.mulf %272, %273 : vector<1x256xf32>
    %275 = arith.addf %271, %274 : vector<1x256xf32>
    %c17 = arith.constant 17 : index
    %276 = memref.load %arg1[%c17] : memref<98xf32, #tpu.memory_space<smem>>
    %c66 = arith.constant 66 : index
    %277 = memref.load %arg1[%c66] : memref<98xf32, #tpu.memory_space<smem>>
    %c0_100 = arith.constant 0 : index
    %c112 = arith.constant 112 : index
    %278 = vector.load %arg5[%c0_100, %c112] : memref<1x435xf32, #tpu.memory_space<vmem>>, vector<1x256xf32>
    %279 = vector.broadcast %276 : f32 to vector<1x256xf32>
    %280 = arith.mulf %278, %279 : vector<1x256xf32>
    %281 = arith.addf %275, %280 : vector<1x256xf32>
    %c0_101 = arith.constant 0 : index
    %c112_102 = arith.constant 112 : index
    %282 = vector.load %arg6[%c0_101, %c112_102] : memref<1x435xf32, #tpu.memory_space<vmem>>, vector<1x256xf32>
    %283 = vector.broadcast %277 : f32 to vector<1x256xf32>
    %284 = arith.mulf %282, %283 : vector<1x256xf32>
    %285 = arith.addf %281, %284 : vector<1x256xf32>
    %c24 = arith.constant 24 : index
    %286 = memref.load %arg1[%c24] : memref<98xf32, #tpu.memory_space<smem>>
    %c73 = arith.constant 73 : index
    %287 = memref.load %arg1[%c73] : memref<98xf32, #tpu.memory_space<smem>>
    %c0_103 = arith.constant 0 : index
    %c128_104 = arith.constant 128 : index
    %288 = vector.load %arg5[%c0_103, %c128_104] : memref<1x435xf32, #tpu.memory_space<vmem>>, vector<1x256xf32>
    %289 = vector.broadcast %286 : f32 to vector<1x256xf32>
    %290 = arith.mulf %288, %289 : vector<1x256xf32>
    %291 = arith.addf %285, %290 : vector<1x256xf32>
    %c0_105 = arith.constant 0 : index
    %c128_106 = arith.constant 128 : index
    %292 = vector.load %arg6[%c0_105, %c128_106] : memref<1x435xf32, #tpu.memory_space<vmem>>, vector<1x256xf32>
    %293 = vector.broadcast %287 : f32 to vector<1x256xf32>
    %294 = arith.mulf %292, %293 : vector<1x256xf32>
    %295 = arith.addf %291, %294 : vector<1x256xf32>
    %c31 = arith.constant 31 : index
    %296 = memref.load %arg1[%c31] : memref<98xf32, #tpu.memory_space<smem>>
    %c80_107 = arith.constant 80 : index
    %297 = memref.load %arg1[%c80_107] : memref<98xf32, #tpu.memory_space<smem>>
    %c0_108 = arith.constant 0 : index
    %c144 = arith.constant 144 : index
    %298 = vector.load %arg5[%c0_108, %c144] : memref<1x435xf32, #tpu.memory_space<vmem>>, vector<1x256xf32>
    %299 = vector.broadcast %296 : f32 to vector<1x256xf32>
    %300 = arith.mulf %298, %299 : vector<1x256xf32>
    %301 = arith.addf %295, %300 : vector<1x256xf32>
    %c0_109 = arith.constant 0 : index
    %c144_110 = arith.constant 144 : index
    %302 = vector.load %arg6[%c0_109, %c144_110] : memref<1x435xf32, #tpu.memory_space<vmem>>, vector<1x256xf32>
    %303 = vector.broadcast %297 : f32 to vector<1x256xf32>
    %304 = arith.mulf %302, %303 : vector<1x256xf32>
    %305 = arith.addf %301, %304 : vector<1x256xf32>
    %c38 = arith.constant 38 : index
    %306 = memref.load %arg1[%c38] : memref<98xf32, #tpu.memory_space<smem>>
    %c87 = arith.constant 87 : index
    %307 = memref.load %arg1[%c87] : memref<98xf32, #tpu.memory_space<smem>>
    %c0_111 = arith.constant 0 : index
    %c160 = arith.constant 160 : index
    %308 = vector.load %arg5[%c0_111, %c160] : memref<1x435xf32, #tpu.memory_space<vmem>>, vector<1x256xf32>
    %309 = vector.broadcast %306 : f32 to vector<1x256xf32>
    %310 = arith.mulf %308, %309 : vector<1x256xf32>
    %311 = arith.addf %305, %310 : vector<1x256xf32>
    %c0_112 = arith.constant 0 : index
    %c160_113 = arith.constant 160 : index
    %312 = vector.load %arg6[%c0_112, %c160_113] : memref<1x435xf32, #tpu.memory_space<vmem>>, vector<1x256xf32>
    %313 = vector.broadcast %307 : f32 to vector<1x256xf32>
    %314 = arith.mulf %312, %313 : vector<1x256xf32>
    %315 = arith.addf %311, %314 : vector<1x256xf32>
    %c45 = arith.constant 45 : index
    %316 = memref.load %arg1[%c45] : memref<98xf32, #tpu.memory_space<smem>>
    %c94_114 = arith.constant 94 : index
    %317 = memref.load %arg1[%c94_114] : memref<98xf32, #tpu.memory_space<smem>>
    %c0_115 = arith.constant 0 : index
    %c176 = arith.constant 176 : index
    %318 = vector.load %arg5[%c0_115, %c176] : memref<1x435xf32, #tpu.memory_space<vmem>>, vector<1x256xf32>
    %319 = vector.broadcast %316 : f32 to vector<1x256xf32>
    %320 = arith.mulf %318, %319 : vector<1x256xf32>
    %321 = arith.addf %315, %320 : vector<1x256xf32>
    %c0_116 = arith.constant 0 : index
    %c176_117 = arith.constant 176 : index
    %322 = vector.load %arg6[%c0_116, %c176_117] : memref<1x435xf32, #tpu.memory_space<vmem>>, vector<1x256xf32>
    %323 = vector.broadcast %317 : f32 to vector<1x256xf32>
    %324 = arith.mulf %322, %323 : vector<1x256xf32>
    %325 = arith.addf %321, %324 : vector<1x256xf32>
    %326 = arith.addf %254, %325 : vector<1x256xf32>
    %cst_118 = arith.constant 0.000000e+00 : f32
    %327 = vector.broadcast %cst_118 : f32 to vector<1x256xf32>
    %c4 = arith.constant 4 : index
    %328 = memref.load %arg1[%c4] : memref<98xf32, #tpu.memory_space<smem>>
    %c53 = arith.constant 53 : index
    %329 = memref.load %arg1[%c53] : memref<98xf32, #tpu.memory_space<smem>>
    %c0_119 = arith.constant 0 : index
    %c81 = arith.constant 81 : index
    %330 = vector.load %arg5[%c0_119, %c81] : memref<1x435xf32, #tpu.memory_space<vmem>>, vector<1x256xf32>
    %331 = vector.broadcast %328 : f32 to vector<1x256xf32>
    %332 = arith.mulf %330, %331 : vector<1x256xf32>
    %333 = arith.addf %327, %332 : vector<1x256xf32>
    %c0_120 = arith.constant 0 : index
    %c81_121 = arith.constant 81 : index
    %334 = vector.load %arg6[%c0_120, %c81_121] : memref<1x435xf32, #tpu.memory_space<vmem>>, vector<1x256xf32>
    %335 = vector.broadcast %329 : f32 to vector<1x256xf32>
    %336 = arith.mulf %334, %335 : vector<1x256xf32>
    %337 = arith.addf %333, %336 : vector<1x256xf32>
    %c11 = arith.constant 11 : index
    %338 = memref.load %arg1[%c11] : memref<98xf32, #tpu.memory_space<smem>>
    %c60 = arith.constant 60 : index
    %339 = memref.load %arg1[%c60] : memref<98xf32, #tpu.memory_space<smem>>
    %c0_122 = arith.constant 0 : index
    %c97 = arith.constant 97 : index
    %340 = vector.load %arg5[%c0_122, %c97] : memref<1x435xf32, #tpu.memory_space<vmem>>, vector<1x256xf32>
    %341 = vector.broadcast %338 : f32 to vector<1x256xf32>
    %342 = arith.mulf %340, %341 : vector<1x256xf32>
    %343 = arith.addf %337, %342 : vector<1x256xf32>
    %c0_123 = arith.constant 0 : index
    %c97_124 = arith.constant 97 : index
    %344 = vector.load %arg6[%c0_123, %c97_124] : memref<1x435xf32, #tpu.memory_space<vmem>>, vector<1x256xf32>
    %345 = vector.broadcast %339 : f32 to vector<1x256xf32>
    %346 = arith.mulf %344, %345 : vector<1x256xf32>
    %347 = arith.addf %343, %346 : vector<1x256xf32>
    %c18 = arith.constant 18 : index
    %348 = memref.load %arg1[%c18] : memref<98xf32, #tpu.memory_space<smem>>
    %c67 = arith.constant 67 : index
    %349 = memref.load %arg1[%c67] : memref<98xf32, #tpu.memory_space<smem>>
    %c0_125 = arith.constant 0 : index
    %c113 = arith.constant 113 : index
    %350 = vector.load %arg5[%c0_125, %c113] : memref<1x435xf32, #tpu.memory_space<vmem>>, vector<1x256xf32>
    %351 = vector.broadcast %348 : f32 to vector<1x256xf32>
    %352 = arith.mulf %350, %351 : vector<1x256xf32>
    %353 = arith.addf %347, %352 : vector<1x256xf32>
    %c0_126 = arith.constant 0 : index
    %c113_127 = arith.constant 113 : index
    %354 = vector.load %arg6[%c0_126, %c113_127] : memref<1x435xf32, #tpu.memory_space<vmem>>, vector<1x256xf32>
    %355 = vector.broadcast %349 : f32 to vector<1x256xf32>
    %356 = arith.mulf %354, %355 : vector<1x256xf32>
    %357 = arith.addf %353, %356 : vector<1x256xf32>
    %c25 = arith.constant 25 : index
    %358 = memref.load %arg1[%c25] : memref<98xf32, #tpu.memory_space<smem>>
    %c74 = arith.constant 74 : index
    %359 = memref.load %arg1[%c74] : memref<98xf32, #tpu.memory_space<smem>>
    %c0_128 = arith.constant 0 : index
    %c129 = arith.constant 129 : index
    %360 = vector.load %arg5[%c0_128, %c129] : memref<1x435xf32, #tpu.memory_space<vmem>>, vector<1x256xf32>
    %361 = vector.broadcast %358 : f32 to vector<1x256xf32>
    %362 = arith.mulf %360, %361 : vector<1x256xf32>
    %363 = arith.addf %357, %362 : vector<1x256xf32>
    %c0_129 = arith.constant 0 : index
    %c129_130 = arith.constant 129 : index
    %364 = vector.load %arg6[%c0_129, %c129_130] : memref<1x435xf32, #tpu.memory_space<vmem>>, vector<1x256xf32>
    %365 = vector.broadcast %359 : f32 to vector<1x256xf32>
    %366 = arith.mulf %364, %365 : vector<1x256xf32>
    %367 = arith.addf %363, %366 : vector<1x256xf32>
    %c32 = arith.constant 32 : index
    %368 = memref.load %arg1[%c32] : memref<98xf32, #tpu.memory_space<smem>>
    %c81_131 = arith.constant 81 : index
    %369 = memref.load %arg1[%c81_131] : memref<98xf32, #tpu.memory_space<smem>>
    %c0_132 = arith.constant 0 : index
    %c145 = arith.constant 145 : index
    %370 = vector.load %arg5[%c0_132, %c145] : memref<1x435xf32, #tpu.memory_space<vmem>>, vector<1x256xf32>
    %371 = vector.broadcast %368 : f32 to vector<1x256xf32>
    %372 = arith.mulf %370, %371 : vector<1x256xf32>
    %373 = arith.addf %367, %372 : vector<1x256xf32>
    %c0_133 = arith.constant 0 : index
    %c145_134 = arith.constant 145 : index
    %374 = vector.load %arg6[%c0_133, %c145_134] : memref<1x435xf32, #tpu.memory_space<vmem>>, vector<1x256xf32>
    %375 = vector.broadcast %369 : f32 to vector<1x256xf32>
    %376 = arith.mulf %374, %375 : vector<1x256xf32>
    %377 = arith.addf %373, %376 : vector<1x256xf32>
    %c39 = arith.constant 39 : index
    %378 = memref.load %arg1[%c39] : memref<98xf32, #tpu.memory_space<smem>>
    %c88 = arith.constant 88 : index
    %379 = memref.load %arg1[%c88] : memref<98xf32, #tpu.memory_space<smem>>
    %c0_135 = arith.constant 0 : index
    %c161 = arith.constant 161 : index
    %380 = vector.load %arg5[%c0_135, %c161] : memref<1x435xf32, #tpu.memory_space<vmem>>, vector<1x256xf32>
    %381 = vector.broadcast %378 : f32 to vector<1x256xf32>
    %382 = arith.mulf %380, %381 : vector<1x256xf32>
    %383 = arith.addf %377, %382 : vector<1x256xf32>
    %c0_136 = arith.constant 0 : index
    %c161_137 = arith.constant 161 : index
    %384 = vector.load %arg6[%c0_136, %c161_137] : memref<1x435xf32, #tpu.memory_space<vmem>>, vector<1x256xf32>
    %385 = vector.broadcast %379 : f32 to vector<1x256xf32>
    %386 = arith.mulf %384, %385 : vector<1x256xf32>
    %387 = arith.addf %383, %386 : vector<1x256xf32>
    %c46 = arith.constant 46 : index
    %388 = memref.load %arg1[%c46] : memref<98xf32, #tpu.memory_space<smem>>
    %c95_138 = arith.constant 95 : index
    %389 = memref.load %arg1[%c95_138] : memref<98xf32, #tpu.memory_space<smem>>
    %c0_139 = arith.constant 0 : index
    %c177 = arith.constant 177 : index
    %390 = vector.load %arg5[%c0_139, %c177] : memref<1x435xf32, #tpu.memory_space<vmem>>, vector<1x256xf32>
    %391 = vector.broadcast %388 : f32 to vector<1x256xf32>
    %392 = arith.mulf %390, %391 : vector<1x256xf32>
    %393 = arith.addf %387, %392 : vector<1x256xf32>
    %c0_140 = arith.constant 0 : index
    %c177_141 = arith.constant 177 : index
    %394 = vector.load %arg6[%c0_140, %c177_141] : memref<1x435xf32, #tpu.memory_space<vmem>>, vector<1x256xf32>
    %395 = vector.broadcast %389 : f32 to vector<1x256xf32>
    %396 = arith.mulf %394, %395 : vector<1x256xf32>
    %397 = arith.addf %393, %396 : vector<1x256xf32>
    %c-1_i32 = arith.constant -1 : i32
    %398 = vector.broadcast %c-1_i32 : i32 to vector<1x256xi32>
    %399 = arith.cmpi sge, %16, %398 : vector<1x256xi32>
    %c15_i32 = arith.constant 15 : i32
    %400 = vector.broadcast %c15_i32 : i32 to vector<1x256xi32>
    %401 = arith.cmpi slt, %16, %400 : vector<1x256xi32>
    %402 = arith.andi %399, %401 : vector<1x256xi1>
    %cst_142 = arith.constant 0.000000e+00 : f32
    %403 = vector.broadcast %cst_142 : f32 to vector<1x256xf32>
    %404 = arith.select %402, %397, %403 : vector<1x256xi1>, vector<1x256xf32>
    %405 = arith.addf %326, %404 : vector<1x256xf32>
    %cst_143 = arith.constant 0.000000e+00 : f32
    %406 = vector.broadcast %cst_143 : f32 to vector<1x256xf32>
    %c5 = arith.constant 5 : index
    %407 = memref.load %arg1[%c5] : memref<98xf32, #tpu.memory_space<smem>>
    %c54 = arith.constant 54 : index
    %408 = memref.load %arg1[%c54] : memref<98xf32, #tpu.memory_space<smem>>
    %c0_144 = arith.constant 0 : index
    %c82 = arith.constant 82 : index
    %409 = vector.load %arg5[%c0_144, %c82] : memref<1x435xf32, #tpu.memory_space<vmem>>, vector<1x256xf32>
    %410 = vector.broadcast %407 : f32 to vector<1x256xf32>
    %411 = arith.mulf %409, %410 : vector<1x256xf32>
    %412 = arith.addf %406, %411 : vector<1x256xf32>
    %c0_145 = arith.constant 0 : index
    %c82_146 = arith.constant 82 : index
    %413 = vector.load %arg6[%c0_145, %c82_146] : memref<1x435xf32, #tpu.memory_space<vmem>>, vector<1x256xf32>
    %414 = vector.broadcast %408 : f32 to vector<1x256xf32>
    %415 = arith.mulf %413, %414 : vector<1x256xf32>
    %416 = arith.addf %412, %415 : vector<1x256xf32>
    %c12 = arith.constant 12 : index
    %417 = memref.load %arg1[%c12] : memref<98xf32, #tpu.memory_space<smem>>
    %c61 = arith.constant 61 : index
    %418 = memref.load %arg1[%c61] : memref<98xf32, #tpu.memory_space<smem>>
    %c0_147 = arith.constant 0 : index
    %c98 = arith.constant 98 : index
    %419 = vector.load %arg5[%c0_147, %c98] : memref<1x435xf32, #tpu.memory_space<vmem>>, vector<1x256xf32>
    %420 = vector.broadcast %417 : f32 to vector<1x256xf32>
    %421 = arith.mulf %419, %420 : vector<1x256xf32>
    %422 = arith.addf %416, %421 : vector<1x256xf32>
    %c0_148 = arith.constant 0 : index
    %c98_149 = arith.constant 98 : index
    %423 = vector.load %arg6[%c0_148, %c98_149] : memref<1x435xf32, #tpu.memory_space<vmem>>, vector<1x256xf32>
    %424 = vector.broadcast %418 : f32 to vector<1x256xf32>
    %425 = arith.mulf %423, %424 : vector<1x256xf32>
    %426 = arith.addf %422, %425 : vector<1x256xf32>
    %c19 = arith.constant 19 : index
    %427 = memref.load %arg1[%c19] : memref<98xf32, #tpu.memory_space<smem>>
    %c68 = arith.constant 68 : index
    %428 = memref.load %arg1[%c68] : memref<98xf32, #tpu.memory_space<smem>>
    %c0_150 = arith.constant 0 : index
    %c114 = arith.constant 114 : index
    %429 = vector.load %arg5[%c0_150, %c114] : memref<1x435xf32, #tpu.memory_space<vmem>>, vector<1x256xf32>
    %430 = vector.broadcast %427 : f32 to vector<1x256xf32>
    %431 = arith.mulf %429, %430 : vector<1x256xf32>
    %432 = arith.addf %426, %431 : vector<1x256xf32>
    %c0_151 = arith.constant 0 : index
    %c114_152 = arith.constant 114 : index
    %433 = vector.load %arg6[%c0_151, %c114_152] : memref<1x435xf32, #tpu.memory_space<vmem>>, vector<1x256xf32>
    %434 = vector.broadcast %428 : f32 to vector<1x256xf32>
    %435 = arith.mulf %433, %434 : vector<1x256xf32>
    %436 = arith.addf %432, %435 : vector<1x256xf32>
    %c26 = arith.constant 26 : index
    %437 = memref.load %arg1[%c26] : memref<98xf32, #tpu.memory_space<smem>>
    %c75 = arith.constant 75 : index
    %438 = memref.load %arg1[%c75] : memref<98xf32, #tpu.memory_space<smem>>
    %c0_153 = arith.constant 0 : index
    %c130 = arith.constant 130 : index
    %439 = vector.load %arg5[%c0_153, %c130] : memref<1x435xf32, #tpu.memory_space<vmem>>, vector<1x256xf32>
    %440 = vector.broadcast %437 : f32 to vector<1x256xf32>
    %441 = arith.mulf %439, %440 : vector<1x256xf32>
    %442 = arith.addf %436, %441 : vector<1x256xf32>
    %c0_154 = arith.constant 0 : index
    %c130_155 = arith.constant 130 : index
    %443 = vector.load %arg6[%c0_154, %c130_155] : memref<1x435xf32, #tpu.memory_space<vmem>>, vector<1x256xf32>
    %444 = vector.broadcast %438 : f32 to vector<1x256xf32>
    %445 = arith.mulf %443, %444 : vector<1x256xf32>
    %446 = arith.addf %442, %445 : vector<1x256xf32>
    %c33 = arith.constant 33 : index
    %447 = memref.load %arg1[%c33] : memref<98xf32, #tpu.memory_space<smem>>
    %c82_156 = arith.constant 82 : index
    %448 = memref.load %arg1[%c82_156] : memref<98xf32, #tpu.memory_space<smem>>
    %c0_157 = arith.constant 0 : index
    %c146 = arith.constant 146 : index
    %449 = vector.load %arg5[%c0_157, %c146] : memref<1x435xf32, #tpu.memory_space<vmem>>, vector<1x256xf32>
    %450 = vector.broadcast %447 : f32 to vector<1x256xf32>
    %451 = arith.mulf %449, %450 : vector<1x256xf32>
    %452 = arith.addf %446, %451 : vector<1x256xf32>
    %c0_158 = arith.constant 0 : index
    %c146_159 = arith.constant 146 : index
    %453 = vector.load %arg6[%c0_158, %c146_159] : memref<1x435xf32, #tpu.memory_space<vmem>>, vector<1x256xf32>
    %454 = vector.broadcast %448 : f32 to vector<1x256xf32>
    %455 = arith.mulf %453, %454 : vector<1x256xf32>
    %456 = arith.addf %452, %455 : vector<1x256xf32>
    %c40 = arith.constant 40 : index
    %457 = memref.load %arg1[%c40] : memref<98xf32, #tpu.memory_space<smem>>
    %c89 = arith.constant 89 : index
    %458 = memref.load %arg1[%c89] : memref<98xf32, #tpu.memory_space<smem>>
    %c0_160 = arith.constant 0 : index
    %c162 = arith.constant 162 : index
    %459 = vector.load %arg5[%c0_160, %c162] : memref<1x435xf32, #tpu.memory_space<vmem>>, vector<1x256xf32>
    %460 = vector.broadcast %457 : f32 to vector<1x256xf32>
    %461 = arith.mulf %459, %460 : vector<1x256xf32>
    %462 = arith.addf %456, %461 : vector<1x256xf32>
    %c0_161 = arith.constant 0 : index
    %c162_162 = arith.constant 162 : index
    %463 = vector.load %arg6[%c0_161, %c162_162] : memref<1x435xf32, #tpu.memory_space<vmem>>, vector<1x256xf32>
    %464 = vector.broadcast %458 : f32 to vector<1x256xf32>
    %465 = arith.mulf %463, %464 : vector<1x256xf32>
    %466 = arith.addf %462, %465 : vector<1x256xf32>
    %c47 = arith.constant 47 : index
    %467 = memref.load %arg1[%c47] : memref<98xf32, #tpu.memory_space<smem>>
    %c96_163 = arith.constant 96 : index
    %468 = memref.load %arg1[%c96_163] : memref<98xf32, #tpu.memory_space<smem>>
    %c0_164 = arith.constant 0 : index
    %c178 = arith.constant 178 : index
    %469 = vector.load %arg5[%c0_164, %c178] : memref<1x435xf32, #tpu.memory_space<vmem>>, vector<1x256xf32>
    %470 = vector.broadcast %467 : f32 to vector<1x256xf32>
    %471 = arith.mulf %469, %470 : vector<1x256xf32>
    %472 = arith.addf %466, %471 : vector<1x256xf32>
    %c0_165 = arith.constant 0 : index
    %c178_166 = arith.constant 178 : index
    %473 = vector.load %arg6[%c0_165, %c178_166] : memref<1x435xf32, #tpu.memory_space<vmem>>, vector<1x256xf32>
    %474 = vector.broadcast %468 : f32 to vector<1x256xf32>
    %475 = arith.mulf %473, %474 : vector<1x256xf32>
    %476 = arith.addf %472, %475 : vector<1x256xf32>
    %c-2_i32 = arith.constant -2 : i32
    %477 = vector.broadcast %c-2_i32 : i32 to vector<1x256xi32>
    %478 = arith.cmpi sge, %16, %477 : vector<1x256xi32>
    %c14_i32 = arith.constant 14 : i32
    %479 = vector.broadcast %c14_i32 : i32 to vector<1x256xi32>
    %480 = arith.cmpi slt, %16, %479 : vector<1x256xi32>
    %481 = arith.andi %478, %480 : vector<1x256xi1>
    %cst_167 = arith.constant 0.000000e+00 : f32
    %482 = vector.broadcast %cst_167 : f32 to vector<1x256xf32>
    %483 = arith.select %481, %476, %482 : vector<1x256xi1>, vector<1x256xf32>
    %484 = arith.addf %405, %483 : vector<1x256xf32>
    %cst_168 = arith.constant 0.000000e+00 : f32
    %485 = vector.broadcast %cst_168 : f32 to vector<1x256xf32>
    %c6 = arith.constant 6 : index
    %486 = memref.load %arg1[%c6] : memref<98xf32, #tpu.memory_space<smem>>
    %c55 = arith.constant 55 : index
    %487 = memref.load %arg1[%c55] : memref<98xf32, #tpu.memory_space<smem>>
    %c0_169 = arith.constant 0 : index
    %c83 = arith.constant 83 : index
    %488 = vector.load %arg5[%c0_169, %c83] : memref<1x435xf32, #tpu.memory_space<vmem>>, vector<1x256xf32>
    %489 = vector.broadcast %486 : f32 to vector<1x256xf32>
    %490 = arith.mulf %488, %489 : vector<1x256xf32>
    %491 = arith.addf %485, %490 : vector<1x256xf32>
    %c0_170 = arith.constant 0 : index
    %c83_171 = arith.constant 83 : index
    %492 = vector.load %arg6[%c0_170, %c83_171] : memref<1x435xf32, #tpu.memory_space<vmem>>, vector<1x256xf32>
    %493 = vector.broadcast %487 : f32 to vector<1x256xf32>
    %494 = arith.mulf %492, %493 : vector<1x256xf32>
    %495 = arith.addf %491, %494 : vector<1x256xf32>
    %c13 = arith.constant 13 : index
    %496 = memref.load %arg1[%c13] : memref<98xf32, #tpu.memory_space<smem>>
    %c62 = arith.constant 62 : index
    %497 = memref.load %arg1[%c62] : memref<98xf32, #tpu.memory_space<smem>>
    %c0_172 = arith.constant 0 : index
    %c99 = arith.constant 99 : index
    %498 = vector.load %arg5[%c0_172, %c99] : memref<1x435xf32, #tpu.memory_space<vmem>>, vector<1x256xf32>
    %499 = vector.broadcast %496 : f32 to vector<1x256xf32>
    %500 = arith.mulf %498, %499 : vector<1x256xf32>
    %501 = arith.addf %495, %500 : vector<1x256xf32>
    %c0_173 = arith.constant 0 : index
    %c99_174 = arith.constant 99 : index
    %502 = vector.load %arg6[%c0_173, %c99_174] : memref<1x435xf32, #tpu.memory_space<vmem>>, vector<1x256xf32>
    %503 = vector.broadcast %497 : f32 to vector<1x256xf32>
    %504 = arith.mulf %502, %503 : vector<1x256xf32>
    %505 = arith.addf %501, %504 : vector<1x256xf32>
    %c20 = arith.constant 20 : index
    %506 = memref.load %arg1[%c20] : memref<98xf32, #tpu.memory_space<smem>>
    %c69 = arith.constant 69 : index
    %507 = memref.load %arg1[%c69] : memref<98xf32, #tpu.memory_space<smem>>
    %c0_175 = arith.constant 0 : index
    %c115 = arith.constant 115 : index
    %508 = vector.load %arg5[%c0_175, %c115] : memref<1x435xf32, #tpu.memory_space<vmem>>, vector<1x256xf32>
    %509 = vector.broadcast %506 : f32 to vector<1x256xf32>
    %510 = arith.mulf %508, %509 : vector<1x256xf32>
    %511 = arith.addf %505, %510 : vector<1x256xf32>
    %c0_176 = arith.constant 0 : index
    %c115_177 = arith.constant 115 : index
    %512 = vector.load %arg6[%c0_176, %c115_177] : memref<1x435xf32, #tpu.memory_space<vmem>>, vector<1x256xf32>
    %513 = vector.broadcast %507 : f32 to vector<1x256xf32>
    %514 = arith.mulf %512, %513 : vector<1x256xf32>
    %515 = arith.addf %511, %514 : vector<1x256xf32>
    %c27 = arith.constant 27 : index
    %516 = memref.load %arg1[%c27] : memref<98xf32, #tpu.memory_space<smem>>
    %c76 = arith.constant 76 : index
    %517 = memref.load %arg1[%c76] : memref<98xf32, #tpu.memory_space<smem>>
    %c0_178 = arith.constant 0 : index
    %c131 = arith.constant 131 : index
    %518 = vector.load %arg5[%c0_178, %c131] : memref<1x435xf32, #tpu.memory_space<vmem>>, vector<1x256xf32>
    %519 = vector.broadcast %516 : f32 to vector<1x256xf32>
    %520 = arith.mulf %518, %519 : vector<1x256xf32>
    %521 = arith.addf %515, %520 : vector<1x256xf32>
    %c0_179 = arith.constant 0 : index
    %c131_180 = arith.constant 131 : index
    %522 = vector.load %arg6[%c0_179, %c131_180] : memref<1x435xf32, #tpu.memory_space<vmem>>, vector<1x256xf32>
    %523 = vector.broadcast %517 : f32 to vector<1x256xf32>
    %524 = arith.mulf %522, %523 : vector<1x256xf32>
    %525 = arith.addf %521, %524 : vector<1x256xf32>
    %c34 = arith.constant 34 : index
    %526 = memref.load %arg1[%c34] : memref<98xf32, #tpu.memory_space<smem>>
    %c83_181 = arith.constant 83 : index
    %527 = memref.load %arg1[%c83_181] : memref<98xf32, #tpu.memory_space<smem>>
    %c0_182 = arith.constant 0 : index
    %c147 = arith.constant 147 : index
    %528 = vector.load %arg5[%c0_182, %c147] : memref<1x435xf32, #tpu.memory_space<vmem>>, vector<1x256xf32>
    %529 = vector.broadcast %526 : f32 to vector<1x256xf32>
    %530 = arith.mulf %528, %529 : vector<1x256xf32>
    %531 = arith.addf %525, %530 : vector<1x256xf32>
    %c0_183 = arith.constant 0 : index
    %c147_184 = arith.constant 147 : index
    %532 = vector.load %arg6[%c0_183, %c147_184] : memref<1x435xf32, #tpu.memory_space<vmem>>, vector<1x256xf32>
    %533 = vector.broadcast %527 : f32 to vector<1x256xf32>
    %534 = arith.mulf %532, %533 : vector<1x256xf32>
    %535 = arith.addf %531, %534 : vector<1x256xf32>
    %c41 = arith.constant 41 : index
    %536 = memref.load %arg1[%c41] : memref<98xf32, #tpu.memory_space<smem>>
    %c90 = arith.constant 90 : index
    %537 = memref.load %arg1[%c90] : memref<98xf32, #tpu.memory_space<smem>>
    %c0_185 = arith.constant 0 : index
    %c163 = arith.constant 163 : index
    %538 = vector.load %arg5[%c0_185, %c163] : memref<1x435xf32, #tpu.memory_space<vmem>>, vector<1x256xf32>
    %539 = vector.broadcast %536 : f32 to vector<1x256xf32>
    %540 = arith.mulf %538, %539 : vector<1x256xf32>
    %541 = arith.addf %535, %540 : vector<1x256xf32>
    %c0_186 = arith.constant 0 : index
    %c163_187 = arith.constant 163 : index
    %542 = vector.load %arg6[%c0_186, %c163_187] : memref<1x435xf32, #tpu.memory_space<vmem>>, vector<1x256xf32>
    %543 = vector.broadcast %537 : f32 to vector<1x256xf32>
    %544 = arith.mulf %542, %543 : vector<1x256xf32>
    %545 = arith.addf %541, %544 : vector<1x256xf32>
    %c48 = arith.constant 48 : index
    %546 = memref.load %arg1[%c48] : memref<98xf32, #tpu.memory_space<smem>>
    %c97_188 = arith.constant 97 : index
    %547 = memref.load %arg1[%c97_188] : memref<98xf32, #tpu.memory_space<smem>>
    %c0_189 = arith.constant 0 : index
    %c179 = arith.constant 179 : index
    %548 = vector.load %arg5[%c0_189, %c179] : memref<1x435xf32, #tpu.memory_space<vmem>>, vector<1x256xf32>
    %549 = vector.broadcast %546 : f32 to vector<1x256xf32>
    %550 = arith.mulf %548, %549 : vector<1x256xf32>
    %551 = arith.addf %545, %550 : vector<1x256xf32>
    %c0_190 = arith.constant 0 : index
    %c179_191 = arith.constant 179 : index
    %552 = vector.load %arg6[%c0_190, %c179_191] : memref<1x435xf32, #tpu.memory_space<vmem>>, vector<1x256xf32>
    %553 = vector.broadcast %547 : f32 to vector<1x256xf32>
    %554 = arith.mulf %552, %553 : vector<1x256xf32>
    %555 = arith.addf %551, %554 : vector<1x256xf32>
    %c-3_i32 = arith.constant -3 : i32
    %556 = vector.broadcast %c-3_i32 : i32 to vector<1x256xi32>
    %557 = arith.cmpi sge, %16, %556 : vector<1x256xi32>
    %c13_i32 = arith.constant 13 : i32
    %558 = vector.broadcast %c13_i32 : i32 to vector<1x256xi32>
    %559 = arith.cmpi slt, %16, %558 : vector<1x256xi32>
    %560 = arith.andi %557, %559 : vector<1x256xi1>
    %cst_192 = arith.constant 0.000000e+00 : f32
    %561 = vector.broadcast %cst_192 : f32 to vector<1x256xf32>
    %562 = arith.select %560, %555, %561 : vector<1x256xi1>, vector<1x256xf32>
    %563 = arith.addf %484, %562 : vector<1x256xf32>
    %564 = arith.negf %563 : vector<1x256xf32>
    %565 = math.exp %564 : vector<1x256xf32>
    %cst_193 = arith.constant 1.000000e+00 : f32
    %566 = vector.broadcast %cst_193 : f32 to vector<1x256xf32>
    %567 = arith.addf %566, %565 : vector<1x256xf32>
    %568 = arith.divf %566, %567 : vector<1x256xf32>
    %569 = vector.broadcast %568 : vector<1x256xf32> to vector<4x256xf32>
    %570 = arith.mulf %1, %569 : vector<4x256xf32>
    %c0_194 = arith.constant 0 : index
    %c0_195 = arith.constant 0 : index
    %c0_196 = arith.constant 0 : index
    %571 = vector.load %arg4[%c0_194, %c0_195, %c0_196] : memref<1x4x256xf32, #tpu.memory_space<vmem>>, vector<1x4x256xf32>
    %572 = vector.shape_cast %571 : vector<1x4x256xf32> to vector<4x256xf32>
    %573 = vector.shape_cast %570 : vector<4x256xf32> to vector<1x4x256xf32>
    tpu.vector_store %arg4[%c0_194, %c0_195, %c0_196], %573 {strides = array<i32>} : memref<1x4x256xf32, #tpu.memory_space<vmem>>, vector<1x4x256xf32>,
    return
  }
  func.func @transform_0(%arg0: i32) -> i32 {
    %c0_i32 = arith.constant 0 : i32
    %c0_i32_0 = arith.constant 0 : i32
    return %c0_i32 : i32
  }
  func.func @transform_1(%arg0: i32) -> (i32, i32) {
    %c0_i32 = arith.constant 0 : i32
    %c0_i32_0 = arith.constant 0 : i32
    %c0_i32_1 = arith.constant 0 : i32
    return %c0_i32, %c0_i32_0 : i32, i32
  }
  func.func @transform_2(%arg0: i32) -> (i32, i32, i32) {
    %c0_i32 = arith.constant 0 : i32
    %c0_i32_0 = arith.constant 0 : i32
    %c0_i32_1 = arith.constant 0 : i32
    return %arg0, %c0_i32, %c0_i32_0 : i32, i32, i32
  }
  func.func @transform_3(%arg0: i32) -> (i32, i32, i32) {
    %c0_i32 = arith.constant 0 : i32
    %c0_i32_0 = arith.constant 0 : i32
    %c0_i32_1 = arith.constant 0 : i32
    return %arg0, %c0_i32, %c0_i32_0 : i32, i32, i32
  }
}

</mosaic_0001>

<llo_original>
// kernel: tpu_custom_call.1
$region0: #{tpu_custom_call.1}
  #allocation0 [shape = 'u32[]', space=smem, size = 0x4, offset = 0x4, fixed_abs, tag = 'smem constant byte address 0x4 - core index']
  #allocation1 [shape = 'u32[72,128]{1,0:T(1,128)}', space=vmem, size = 0x9000, scoped, tag = 'internal scratch']
  #allocation2 [shape = 'f32[1,435]{1,0:T(1,128)}', space=vmem, size = 0x800, scoped, tag = 'scratch operand']
  #allocation3 [shape = 'f32[1,435]{1,0:T(1,128)}', space=vmem, size = 0x800, scoped, tag = 'scratch operand']
  %s0 = inlined_call_operand.hbm [shape: f32[98], index: 0, kind: input, shape index: {}]
  %s1 = inlined_call_operand.hbm [shape: s32[1,256], index: 1, kind: input, shape index: {}]
  %s2 = inlined_call_operand.hbm [shape: f32[2,4,256], index: 2, kind: input, shape index: {}]
  %s3 = inlined_call_operand.hbm [shape: f32[2,4,256], index: 3, kind: output, shape index: {}]
  %s4 = sld [smem:[#allocation0]]
  $region57: #{tpu_custom_call.1} parent=0
    _
  %s6 = ssub.s32 1, %s4
  %s7 = scalar_select 0, %s6, %s4
  $region1: #{tpu_custom_call.1} parent=0
    #allocation4 [shape = 'u8[512]{0}', space=smem, size = 0x200, scoped, tag = 'input window, operand 0, single buffered']
    #allocation5 [shape = 's32[2]{0}', space=sflag, size = 0x8, scoped, tag = 'scoped memory for tpu_custom_call.1']
    #allocation6 [shape = 's32[2]{0}', space=sflag, size = 0x8, scoped, tag = 'scoped memory for tpu_custom_call.1']
    #allocation7 [shape = 's32[2]{0}', space=sflag, size = 0x8, scoped, tag = 'scoped memory for tpu_custom_call.1']
    #allocation8 [shape = 'u8[1024]{0}', space=vmem, size = 0x400, scoped, tag = 'input window, operand 1, single buffered']
    #allocation9 [shape = 'u8[8192]{0}', space=vmem, size = 0x2000, scoped, tag = 'input window, operand 2']
    #allocation10 [shape = 's32[2]{0}', space=sflag, size = 0x8, scoped, tag = 'scoped memory for tpu_custom_call.1']
    #allocation11 [shape = 'u8[8192]{0}', space=vmem, size = 0x2000, scoped, tag = 'output window, operand 0']
    %8 = vsyncpa [#allocation7], 0
    %9 = vsyncpa [#allocation5], 0
    %10 = vsyncpa [#allocation10], 0
    %s11 = scalar_lea.sflag [#allocation10], 1
    %12 = vsyncpa %s11, 0
    %13 = vsyncpa [#allocation6], 0
    %s14 = scalar_lea.sflag [#allocation6], 1
    %15 = vsyncpa %s14, 0
    loop: start=0, step=1, limit=4
    $region2: #{tpu_custom_call.1} parent=1 // loop_pre_header
      _
    $region3: #{tpu_custom_call.1} parent=1 // loop_header
      %s17 = sphi 0, %s21
      %p18 = scmp.ge.s32.totalorder %s17, 4
      %s25 = sphi 0, %s25
      %s27 = sphi 0, %s25
      %s28 = sphi 0, %s27
      %s42 = sphi 0, %s28
      %s46 = sphi 0, %s46
      %s48 = sphi 0, %s46
      %s49 = sphi 0, %s48
      %s63 = sphi 0, %s49
      %s69 = sphi 0, %s71
      %s72 = sphi 0, %s69
      %s73 = sphi 0, %s72
      %s89 = sphi 0, %s73
      %s95 = sphi 0, %s97
      %s98 = sphi 0, %s95
      %s99 = sphi 0, %s98
      %s115 = sphi 0, %s99
    $region4: #{tpu_custom_call.1} parent=1 // loop_header_branch
      %20 = sbr.rel (%p18) target = $region8
    $region5: #{tpu_custom_call.1} parent=1 // loop_body
      %s22 = ssub.s32 %s17, 1
      %s23 = ssub.s32 %s17, 2
      %s24 = sadd.s32 %s17, 1
      %s26 = sadd.s32 %s25, 1
      %p29 = scmp.eq.s32.totalorder %s17, 1
      %p30 = scmp.ne.s32.totalorder %s25, %s27
      %p31 = scmp.eq.s32.totalorder %s17, 0
      %p32 = por %p30, %p31
      %p33 = scmp.ne.s32.totalorder %s25, %s27
      %p34 = scmp.eq.s32.totalorder %s22, 1
      %p35 = por %p33, %p34
      %p36 = scmp.ne.s32.totalorder %s27, %s28
      %p37 = scmp.eq.s32.totalorder %s22, 0
      %p38 = por %p36, %p37
      %p39 = scmp.ne.s32.totalorder %s27, %s28
      %p40 = scmp.eq.s32.totalorder %s23, 1
      %p41 = por %p39, %p40
      %p43 = scmp.ne.s32.totalorder %s28, %s42
      %p44 = scmp.eq.s32.totalorder %s23, 0
      %p45 = por %p43, %p44
      %s47 = sadd.s32 %s46, 1
      %p50 = scmp.eq.s32.totalorder %s17, 1
      %p51 = scmp.ne.s32.totalorder %s46, %s48
      %p52 = scmp.eq.s32.totalorder %s17, 0
      %p53 = por %p51, %p52
      %p54 = scmp.ne.s32.totalorder %s46, %s48
      %p55 = scmp.eq.s32.totalorder %s22, 1
      %p56 = por %p54, %p55
      %p57 = scmp.ne.s32.totalorder %s48, %s49
      %p58 = scmp.eq.s32.totalorder %s22, 0
      %p59 = por %p57, %p58
      %p60 = scmp.ne.s32.totalorder %s48, %s49
      %p61 = scmp.eq.s32.totalorder %s23, 1
      %p62 = por %p60, %p61
      %p64 = scmp.ne.s32.totalorder %s49, %s63
      %p65 = scmp.eq.s32.totalorder %s23, 0
      %p66 = por %p64, %p65
      %s67 = ssub.s32 %s17, %s24
      %p68 = scmp.eq.s32.totalorder %s67, 0
      %s70 = sadd.s32 %s69, 1
      %s71 = scalar_select %p68, %s69, %s70
      %p74 = pneg %p68
      %p75 = scmp.eq.s32.totalorder %s17, 1
      %p76 = por %p74, %p75
      %p77 = scmp.ne.s32.totalorder %s69, %s72
      %p78 = scmp.eq.s32.totalorder %s17, 0
      %p79 = por %p77, %p78
      %p80 = scmp.ne.s32.totalorder %s69, %s72
      %p81 = scmp.eq.s32.totalorder %s22, 1
      %p82 = por %p80, %p81
      %p83 = scmp.ne.s32.totalorder %s72, %s73
      %p84 = scmp.eq.s32.totalorder %s22, 0
      %p85 = por %p83, %p84
      %p86 = scmp.ne.s32.totalorder %s72, %s73
      %p87 = scmp.eq.s32.totalorder %s23, 1
      %p88 = por %p86, %p87
      %p90 = scmp.ne.s32.totalorder %s73, %s89
      %p91 = scmp.eq.s32.totalorder %s23, 0
      %p92 = por %p90, %p91
      %s93 = ssub.s32 %s17, %s24
      %p94 = scmp.eq.s32.totalorder %s93, 0
      %s96 = sadd.s32 %s95, 1
      %s97 = scalar_select %p94, %s95, %s96
      %p100 = pneg %p94
      %p101 = scmp.eq.s32.totalorder %s17, 1
      %p102 = por %p100, %p101
      %p103 = scmp.ne.s32.totalorder %s95, %s98
      %p104 = scmp.eq.s32.totalorder %s17, 0
      %p105 = por %p103, %p104
      %p106 = scmp.ne.s32.totalorder %s95, %s98
      %p107 = scmp.eq.s32.totalorder %s22, 1
      %p108 = por %p106, %p107
      %p109 = scmp.ne.s32.totalorder %s98, %s99
      %p110 = scmp.eq.s32.totalorder %s22, 0
      %p111 = por %p109, %p110
      %p112 = scmp.ne.s32.totalorder %s98, %s99
      %p113 = scmp.eq.s32.totalorder %s23, 1
      %p114 = por %p112, %p113
      %p116 = scmp.ne.s32.totalorder %s99, %s115
      %p117 = scmp.eq.s32.totalorder %s23, 0
      %p118 = por %p116, %p117
      %p119 = scmp.le.s32.totalorder 1, %s17
      %p120 = scmp.lt.s32.totalorder %s17, 3
      %p121 = pnand %p119, %p120
      %p122 = pneg %p121
      // Predicated region
      $region9: #{tpu_custom_call.1} parent=5 // pred_check
        _
      $region10: #{tpu_custom_call.1} parent=5 // pred_check_branch
        %124 = sbr.rel (%p121) target = $region12
      $region11: #{tpu_custom_call.1} parent=5 // pred_region
        %s125 = ssub.s32 %s17, 1
        // Predicated region
        $region13: #{tpu_custom_call.1} parent=11 // pred_check
          %p126 = pneg %p38
        $region14: #{tpu_custom_call.1} parent=11 // pred_check_branch
          %128 = sbr.rel (%p126) target = $region16
        $region15: #{tpu_custom_call.1} parent=11 // pred_region
          %130 = vsyncadd [#allocation7], 0
          %s132 = sshll.u32 %s0, 4
          %s133 = int_to_ptr.hbm [resolvable:$true] %s132
          %135 = dma.hbm_to_smem %s133, 16, [#allocation4], [#allocation7]
        $region16: #{tpu_custom_call.1} parent=11 // pred_fallthru
          _
        // Predicated region
        $region17: #{tpu_custom_call.1} parent=11 // pred_check
          %p136 = pneg %p59
        $region18: #{tpu_custom_call.1} parent=11 // pred_check_branch
          %138 = sbr.rel (%p136) target = $region20
        $region19: #{tpu_custom_call.1} parent=11 // pred_region
          %140 = vsyncadd [#allocation5], 0
          %s142 = sshll.u32 %s1, 4
          %s143 = int_to_ptr.hbm [resolvable:$true] %s142
          %s144 = sshll.u32 [#allocation8], 4
          %s145 = int_to_ptr.vmem [resolvable:$true] %s144
          %147 = dma.hbm_to_vmem [thread:$0]  %s143, 32, %s145, [#allocation5]
        $region20: #{tpu_custom_call.1} parent=11 // pred_fallthru
          _
      $region12: #{tpu_custom_call.1} parent=5 // pred_fallthru
        _
      %p148 = scmp.lt.s32.totalorder %s17, 2
      // Predicated region
      $region21: #{tpu_custom_call.1} parent=5 // pred_check
        %p149 = pneg %p148
      $region22: #{tpu_custom_call.1} parent=5 // pred_check_branch
        %151 = sbr.rel (%p149) target = $region24
      $region23: #{tpu_custom_call.1} parent=5 // pred_region
        // Predicated region
        $region25: #{tpu_custom_call.1} parent=23 // pred_check
          %p152 = pneg %p79
        $region26: #{tpu_custom_call.1} parent=23 // pred_check_branch
          %154 = sbr.rel (%p152) target = $region28
        $region27: #{tpu_custom_call.1} parent=23 // pred_region
          %s155 = sand.u32 %s69, 1
          %s156 = scalar_lea.sflag [#allocation10], %s155
          %s157 = sand.u32 %s69, 1
          %s158 = smul.addr %s157, 8
          %s159 = scalar_lea.vmem [#allocation9], %s158
          %161 = vsyncadd %s156, 0
          %s162 = smul.addr %s17, 2
          %s163 = smul.addr %s162, 4
          %s164 = scalar_lea.hbm %s2, %s163
          %s166 = sshll.u32 %s164, 4
          %s167 = int_to_ptr.hbm [resolvable:$true] %s166
          %s168 = sshll.u32 %s159, 4
          %s169 = int_to_ptr.vmem [resolvable:$true] %s168
          %171 = dma.hbm_to_vmem [thread:$0]  %s167, 128, %s169, %s156
        $region28: #{tpu_custom_call.1} parent=23 // pred_fallthru
          _
      $region24: #{tpu_custom_call.1} parent=5 // pred_fallthru
        _
      %p172 = scmp.le.s32.totalorder 1, %s17
      %p173 = scmp.lt.s32.totalorder %s17, 3
      %p174 = pnand %p172, %p173
      %p175 = pneg %p174
      // Predicated region
      $region29: #{tpu_custom_call.1} parent=5 // pred_check
        _
      $region30: #{tpu_custom_call.1} parent=5 // pred_check_branch
        %177 = sbr.rel (%p174) target = $region32
      $region31: #{tpu_custom_call.1} parent=5 // pred_region
        %s178 = ssub.s32 %s17, 1
        // Predicated region
        $region33: #{tpu_custom_call.1} parent=31 // pred_check
          %p179 = pneg %p38
        $region34: #{tpu_custom_call.1} parent=31 // pred_check_branch
          %181 = sbr.rel (%p179) target = $region36
        $region35: #{tpu_custom_call.1} parent=31 // pred_region
          %183 = dma.done [#allocation7], 16
        $region36: #{tpu_custom_call.1} parent=31 // pred_fallthru
          _
        // Predicated region
        $region37: #{tpu_custom_call.1} parent=31 // pred_check
          %p184 = pneg %p59
        $region38: #{tpu_custom_call.1} parent=31 // pred_check_branch
          %186 = sbr.rel (%p184) target = $region40
        $region39: #{tpu_custom_call.1} parent=31 // pred_region
          %188 = dma.done [#allocation5], 32
        $region40: #{tpu_custom_call.1} parent=31 // pred_fallthru
          _
        %s189 = sand.u32 %s72, 1
        %s190 = scalar_lea.sflag [#allocation10], %s189
        %s191 = sand.u32 %s72, 1
        %s192 = smul.addr %s191, 8
        %s193 = scalar_lea.vmem [#allocation9], %s192
        // Predicated region
        $region41: #{tpu_custom_call.1} parent=31 // pred_check
          %p194 = pneg %p85
        $region42: #{tpu_custom_call.1} parent=31 // pred_check_branch
          %196 = sbr.rel (%p194) target = $region44
        $region43: #{tpu_custom_call.1} parent=31 // pred_region
          %198 = dma.done %s190, 128
        $region44: #{tpu_custom_call.1} parent=31 // pred_fallthru
          _
        %199 = sfence
        %p200 = pneg %p38
        %p201 = pneg %p35
        %p202 = pneg %p59
        %p203 = pneg %p56
        %s204 = sand.u32 %s72, 1
        %s205 = scalar_lea.sflag [#allocation10], %s204
        %s206 = sand.u32 %s72, 1
        %s207 = smul.addr %s206, 8
        %s208 = scalar_lea.vmem [#allocation9], %s207
        %p209 = pneg %p85
        %p210 = pneg %p82
        %p211 = pneg %p111
        %p212 = pneg %p108
        %s213 = sand.u32 %s98, 1
        %s214 = scalar_lea.sflag [#allocation6], %s213
        %s215 = sand.u32 %s98, 1
        %s216 = smul.addr %s215, 8
        %s217 = scalar_lea.vmem [#allocation11], %s216
        %v218 = vld [vmem:[%s193] sm:$0xff]
        %220 = vst [vmem:[#allocation1] ss:$2 sm:$0xff] %v218
        %v221 = vld.sshfl [vmem:[#allocation1] sm:$0xff pattern:$0x75316420]
        %v222 = vld.sshfl [vmem:[#allocation1 + $0x8] sm:$0xff pattern:$0x75316420]
        %vm225 = vcmask 1043456
        %v226 = vsel %vm225, %v221, 0.0
        %v227 = vrot.slane %v226, 4
        %v228 = vadd.f32 %v226, %v227
        %v229 = vrot.slane %v228, 2
        %v230 = vadd.f32 %v228, %v229
        %v231 = vrot.slane %v230, 1
        %v232 = vadd.f32 %v230, %v231
        %v233 = vsel %vm225, %v222, 0.0
        %v234 = vrot.slane %v233, 4
        %v235 = vadd.f32 %v233, %v234
        %v236 = vrot.slane %v235, 2
        %v237 = vadd.f32 %v235, %v236
        %v238 = vrot.slane %v237, 1
        %v239 = vadd.f32 %v237, %v238
        %v240 = vrcp.pop 4.0
        %v241 = vmul.f32 4.0, %v240
        %v242 = vsub.f32 1.0, %v241
        %v243 = vmul.f32 %v240, %v242
        %v244 = vadd.f32 %v240, %v243
        %vm245 = vweird.f32 %v240
        %v246 = vsel %vm245, %v240, %v244
        %v247 = vmul.f32 %v232, %v246
        %v248 = vmul.f32 %v239, %v246
        %249 = vst [vmem:[#allocation1] ss:$2 sm:$0xff] %v218
        %v250 = vld.sshfl [vmem:[#allocation1] sm:$0xff pattern:$0x75316420]
        %v251 = vld.sshfl [vmem:[#allocation1 + $0x8] sm:$0xff pattern:$0x75316420]
        %v254 = vsel %vm225, %v250, -inf
        %v255 = vrot.slane %v254, 4
        %v256 = vmax.f32 %v254, %v255
        %v257 = vrot.slane %v256, 2
        %v258 = vmax.f32 %v256, %v257
        %v259 = vrot.slane %v258, 1
        %v260 = vmax.f32 %v258, %v259
        %v261 = vsel %vm225, %v251, -inf
        %v262 = vrot.slane %v261, 4
        %v263 = vmax.f32 %v261, %v262
        %v264 = vrot.slane %v263, 2
        %v265 = vmax.f32 %v263, %v264
        %v266 = vrot.slane %v265, 1
        %v267 = vmax.f32 %v265, %v266
        %v268 = vlaneseq
        %vm269 = vcmp.ge.s32.totalorder %v268, 0
        %vm270 = vcmp.lt.s32.totalorder %v268, 128
        %vm271 = vmand %vm269, %vm270
        %272 = vst.msk [vmem:[#allocation2] sm:$0x1] %vm271, 0.0
        %273 = vst.msk [vmem:[#allocation3] sm:$0x1] %vm271, 0.0
        %vm274 = vcmp.lt.s32.totalorder %v268, 51
        %vm275 = vmand %vm269, %vm274
        %276 = vst.msk [vmem:[#allocation2 + $0x3] sm:$0x1] %vm275, 0.0
        %277 = vst.msk [vmem:[#allocation3 + $0x3] sm:$0x1] %vm275, 0.0
        %v280 = vrot.slane %v248, 7
        %vm281 = vcmask 1040384
        %v282 = vsel %vm281, %v247, %v280
        %vm284 = vcmp.lt.s32.totalorder %v268, 256
        %vm285 = vmand %vm269, %vm284
        %286 = vst.msk [vmem:[#allocation2 + $0x1] sm:$0x3] %vm285, %v282
        %v289 = vrot.slane %v267, 7
        %v290 = vsel %vm281, %v260, %v289
        %292 = vst.msk [vmem:[#allocation3 + $0x1] sm:$0x3] %vm285, %v290
        %v293 = vld [vmem:[#allocation8] sm:$0x3]
        %s294 = sld [smem:[#allocation4]]
        %s295 = sld [smem:[#allocation4 + $0x31]]
        %v296 = vld [vmem:[#allocation2] sm:$0x7]
        %v297 = vstv %s294
        %v298 = vmul.f32 %v296, %v297
        %v299 = vadd.f32 %v298, 0.0
        %v300 = vld [vmem:[#allocation3] sm:$0x7]
        %v301 = vstv %s295
        %v302 = vmul.f32 %v300, %v301
        %v303 = vadd.f32 %v299, %v302
        %s304 = sld [smem:[#allocation4 + $0x7]]
        %s305 = sld [smem:[#allocation4 + $0x38]]
        %v306 = vstv %s304
        %v307 = vmul.f32 %v296, %v306
        %309 = vrot.lane.b32.xlu0 %v307, 112
        %v310 = vpop.permute.xlu0 %309
        %v311 = vrot.slane %v310, 1
        %vm312 = vcmask 916480
        %v313 = vsel %vm312, %v310, %v311
        %v315 = vadd.f32 %v303, %v313
        %v316 = vstv %s305
        %v317 = vmul.f32 %v300, %v316
        %319 = vrot.lane.b32.xlu0 %v317, 112
        %v320 = vpop.permute.xlu0 %319
        %v321 = vrot.slane %v320, 1
        %v322 = vsel %vm312, %v320, %v321
        %v324 = vadd.f32 %v315, %v322
        %s325 = sld [smem:[#allocation4 + $0xe]]
        %s326 = sld [smem:[#allocation4 + $0x3f]]
        %v327 = vstv %s325
        %v328 = vmul.f32 %v296, %v327
        %330 = vrot.lane.b32.xlu0 %v328, 96
        %v331 = vpop.permute.xlu0 %330
        %v332 = vrot.slane %v331, 1
        %vm333 = vcmask 785408
        %v334 = vsel %vm333, %v331, %v332
        %v336 = vadd.f32 %v324, %v334
        %v337 = vstv %s326
        %v338 = vmul.f32 %v300, %v337
        %340 = vrot.lane.b32.xlu0 %v338, 96
        %v341 = vpop.permute.xlu0 %340
        %v342 = vrot.slane %v341, 1
        %v343 = vsel %vm333, %v341, %v342
        %v345 = vadd.f32 %v336, %v343
        %s346 = sld [smem:[#allocation4 + $0x15]]
        %s347 = sld [smem:[#allocation4 + $0x46]]
        %v348 = vstv %s346
        %v349 = vmul.f32 %v296, %v348
        %351 = vrot.lane.b32.xlu0 %v349, 80
        %v352 = vpop.permute.xlu0 %351
        %v353 = vrot.slane %v352, 1
        %vm354 = vcmask 654336
        %v355 = vsel %vm354, %v352, %v353
        %v357 = vadd.f32 %v345, %v355
        %v358 = vstv %s347
        %v359 = vmul.f32 %v300, %v358
        %361 = vrot.lane.b32.xlu0 %v359, 80
        %v362 = vpop.permute.xlu0 %361
        %v363 = vrot.slane %v362, 1
        %v364 = vsel %vm354, %v362, %v363
        %v366 = vadd.f32 %v357, %v364
        %s367 = sld [smem:[#allocation4 + $0x1c]]
        %s368 = sld [smem:[#allocation4 + $0x4d]]
        %v369 = vld [vmem:[#allocation2 + $0x1] sm:$0x7]
        %v370 = vstv %s367
        %v371 = vmul.f32 %v369, %v370
        %373 = vrot.lane.b32.xlu0 %v371, 64
        %v374 = vpop.permute.xlu0 %373
        %v375 = vrot.slane %v374, 7
        %vm376 = vcmask 523264
        %v377 = vsel %vm376, %v375, %v374
        %v379 = vadd.f32 %v366, %v377
        %v380 = vld [vmem:[#allocation3 + $0x1] sm:$0x7]
        %v381 = vstv %s368
        %v382 = vmul.f32 %v380, %v381
        %384 = vrot.lane.b32.xlu0 %v382, 64
        %v385 = vpop.permute.xlu0 %384
        %v386 = vrot.slane %v385, 7
        %v387 = vsel %vm376, %v386, %v385
        %v389 = vadd.f32 %v379, %v387
        %s390 = sld [smem:[#allocation4 + $0x23]]
        %s391 = sld [smem:[#allocation4 + $0x54]]
        %v392 = vstv %s390
        %v393 = vmul.f32 %v369, %v392
        %395 = vrot.lane.b32.xlu0 %v393, 48
        %v396 = vpop.permute.xlu0 %395
        %v397 = vrot.slane %v396, 7
        %vm398 = vcmask 392192
        %v399 = vsel %vm398, %v397, %v396
        %v401 = vadd.f32 %v389, %v399
        %v402 = vstv %s391
        %v403 = vmul.f32 %v380, %v402
        %405 = vrot.lane.b32.xlu0 %v403, 48
        %v406 = vpop.permute.xlu0 %405
        %v407 = vrot.slane %v406, 7
        %v408 = vsel %vm398, %v407, %v406
        %v410 = vadd.f32 %v401, %v408
        %s411 = sld [smem:[#allocation4 + $0x2a]]
        %s412 = sld [smem:[#allocation4 + $0x5b]]
        %v413 = vstv %s411
        %v414 = vmul.f32 %v369, %v413
        %416 = vrot.lane.b32.xlu0 %v414, 32
        %v417 = vpop.permute.xlu0 %416
        %v418 = vrot.slane %v417, 7
        %vm419 = vcmask 261120
        %v420 = vsel %vm419, %v418, %v417
        %v422 = vadd.f32 %v410, %v420
        %v423 = vstv %s412
        %v424 = vmul.f32 %v380, %v423
        %426 = vrot.lane.b32.xlu0 %v424, 32
        %v427 = vpop.permute.xlu0 %426
        %v428 = vrot.slane %v427, 7
        %v429 = vsel %vm419, %v428, %v427
        %v431 = vadd.f32 %v422, %v429
        %vm432 = vcmp.ge.s32.totalorder %v293, 3
        %vm433 = vcmp.lt.s32.totalorder %v293, 19
        %vm434 = vmand %vm432, %vm433
        %436 = vrot.lane.b32.xlu0 %v431, 51
        %v437 = vpop.permute.xlu0 %436
        %v438 = vrot.slane %v437, 1
        %vm439 = vcmask 416768
        %v440 = vsel %vm439, %v437, %v438
        %v442 = vsel %vm434, %v440, 0.0
        %v443 = vadd.f32 %v442, 0.0
        %s444 = sld [smem:[#allocation4 + $0x1]]
        %s445 = sld [smem:[#allocation4 + $0x32]]
        %v446 = vstv %s444
        %v447 = vmul.f32 %v296, %v446
        %v448 = vadd.f32 %v447, 0.0
        %v449 = vstv %s445
        %v450 = vmul.f32 %v300, %v449
        %v451 = vadd.f32 %v448, %v450
        %s452 = sld [smem:[#allocation4 + $0x8]]
        %s453 = sld [smem:[#allocation4 + $0x39]]
        %v454 = vstv %s452
        %v455 = vmul.f32 %v296, %v454
        %457 = vrot.lane.b32.xlu0 %v455, 112
        %v458 = vpop.permute.xlu0 %457
        %v459 = vrot.slane %v458, 1
        %v460 = vsel %vm312, %v458, %v459
        %v462 = vadd.f32 %v451, %v460
        %v463 = vstv %s453
        %v464 = vmul.f32 %v300, %v463
        %466 = vrot.lane.b32.xlu0 %v464, 112
        %v467 = vpop.permute.xlu0 %466
        %v468 = vrot.slane %v467, 1
        %v469 = vsel %vm312, %v467, %v468
        %v471 = vadd.f32 %v462, %v469
        %s472 = sld [smem:[#allocation4 + $0xf]]
        %s473 = sld [smem:[#allocation4 + $0x40]]
        %v474 = vstv %s472
        %v475 = vmul.f32 %v296, %v474
        %477 = vrot.lane.b32.xlu0 %v475, 96
        %v478 = vpop.permute.xlu0 %477
        %v479 = vrot.slane %v478, 1
        %v480 = vsel %vm333, %v478, %v479
        %v482 = vadd.f32 %v471, %v480
        %v483 = vstv %s473
        %v484 = vmul.f32 %v300, %v483
        %486 = vrot.lane.b32.xlu0 %v484, 96
        %v487 = vpop.permute.xlu0 %486
        %v488 = vrot.slane %v487, 1
        %v489 = vsel %vm333, %v487, %v488
        %v491 = vadd.f32 %v482, %v489
        %s492 = sld [smem:[#allocation4 + $0x16]]
        %s493 = sld [smem:[#allocation4 + $0x47]]
        %v494 = vstv %s492
        %v495 = vmul.f32 %v296, %v494
        %497 = vrot.lane.b32.xlu0 %v495, 80
        %v498 = vpop.permute.xlu0 %497
        %v499 = vrot.slane %v498, 1
        %v500 = vsel %vm354, %v498, %v499
        %v502 = vadd.f32 %v491, %v500
        %v503 = vstv %s493
        %v504 = vmul.f32 %v300, %v503
        %506 = vrot.lane.b32.xlu0 %v504, 80
        %v507 = vpop.permute.xlu0 %506
        %v508 = vrot.slane %v507, 1
        %v509 = vsel %vm354, %v507, %v508
        %v511 = vadd.f32 %v502, %v509
        %s512 = sld [smem:[#allocation4 + $0x1d]]
        %s513 = sld [smem:[#allocation4 + $0x4e]]
        %v514 = vstv %s512
        %v515 = vmul.f32 %v369, %v514
        %517 = vrot.lane.b32.xlu0 %v515, 64
        %v518 = vpop.permute.xlu0 %517
        %v519 = vrot.slane %v518, 7
        %v520 = vsel %vm376, %v519, %v518
        %v522 = vadd.f32 %v511, %v520
        %v523 = vstv %s513
        %v524 = vmul.f32 %v380, %v523
        %526 = vrot.lane.b32.xlu0 %v524, 64
        %v527 = vpop.permute.xlu0 %526
        %v528 = vrot.slane %v527, 7
        %v529 = vsel %vm376, %v528, %v527
        %v531 = vadd.f32 %v522, %v529
        %s532 = sld [smem:[#allocation4 + $0x24]]
        %s533 = sld [smem:[#allocation4 + $0x55]]
        %v534 = vstv %s532
        %v535 = vmul.f32 %v369, %v534
        %537 = vrot.lane.b32.xlu0 %v535, 48
        %v538 = vpop.permute.xlu0 %537
        %v539 = vrot.slane %v538, 7
        %v540 = vsel %vm398, %v539, %v538
        %v542 = vadd.f32 %v531, %v540
        %v543 = vstv %s533
        %v544 = vmul.f32 %v380, %v543
        %546 = vrot.lane.b32.xlu0 %v544, 48
        %v547 = vpop.permute.xlu0 %546
        %v548 = vrot.slane %v547, 7
        %v549 = vsel %vm398, %v548, %v547
        %v551 = vadd.f32 %v542, %v549
        %s552 = sld [smem:[#allocation4 + $0x2b]]
        %s553 = sld [smem:[#allocation4 + $0x5c]]
        %v554 = vstv %s552
        %v555 = vmul.f32 %v369, %v554
        %557 = vrot.lane.b32.xlu0 %v555, 32
        %v558 = vpop.permute.xlu0 %557
        %v559 = vrot.slane %v558, 7
        %v560 = vsel %vm419, %v559, %v558
        %v562 = vadd.f32 %v551, %v560
        %v563 = vstv %s553
        %v564 = vmul.f32 %v380, %v563
        %566 = vrot.lane.b32.xlu0 %v564, 32
        %v567 = vpop.permute.xlu0 %566
        %v568 = vrot.slane %v567, 7
        %v569 = vsel %vm419, %v568, %v567
        %v571 = vadd.f32 %v562, %v569
        %vm572 = vcmp.ge.s32.totalorder %v293, 2
        %vm573 = vcmp.lt.s32.totalorder %v293, 18
        %vm574 = vmand %vm572, %vm573
        %576 = vrot.lane.b32.xlu0 %v571, 50
        %v577 = vpop.permute.xlu0 %576
        %v578 = vrot.slane %v577, 1
        %vm579 = vcmask 408576
        %v580 = vsel %vm579, %v577, %v578
        %v582 = vsel %vm574, %v580, 0.0
        %v583 = vadd.f32 %v443, %v582
        %s584 = sld [smem:[#allocation4 + $0x2]]
        %s585 = sld [smem:[#allocation4 + $0x33]]
        %v586 = vstv %s584
        %v587 = vmul.f32 %v296, %v586
        %v588 = vadd.f32 %v587, 0.0
        %v589 = vstv %s585
        %v590 = vmul.f32 %v300, %v589
        %v591 = vadd.f32 %v588, %v590
        %s592 = sld [smem:[#allocation4 + $0x9]]
        %s593 = sld [smem:[#allocation4 + $0x3a]]
        %v594 = vstv %s592
        %v595 = vmul.f32 %v296, %v594
        %597 = vrot.lane.b32.xlu0 %v595, 112
        %v598 = vpop.permute.xlu0 %597
        %v599 = vrot.slane %v598, 1
        %v600 = vsel %vm312, %v598, %v599
        %v602 = vadd.f32 %v591, %v600
        %v603 = vstv %s593
        %v604 = vmul.f32 %v300, %v603
        %606 = vrot.lane.b32.xlu0 %v604, 112
        %v607 = vpop.permute.xlu0 %606
        %v608 = vrot.slane %v607, 1
        %v609 = vsel %vm312, %v607, %v608
        %v611 = vadd.f32 %v602, %v609
        %s612 = sld [smem:[#allocation4 + $0x10]]
        %s613 = sld [smem:[#allocation4 + $0x41]]
        %v614 = vstv %s612
        %v615 = vmul.f32 %v296, %v614
        %617 = vrot.lane.b32.xlu0 %v615, 96
        %v618 = vpop.permute.xlu0 %617
        %v619 = vrot.slane %v618, 1
        %v620 = vsel %vm333, %v618, %v619
        %v622 = vadd.f32 %v611, %v620
        %v623 = vstv %s613
        %v624 = vmul.f32 %v300, %v623
        %626 = vrot.lane.b32.xlu0 %v624, 96
        %v627 = vpop.permute.xlu0 %626
        %v628 = vrot.slane %v627, 1
        %v629 = vsel %vm333, %v627, %v628
        %v631 = vadd.f32 %v622, %v629
        %s632 = sld [smem:[#allocation4 + $0x17]]
        %s633 = sld [smem:[#allocation4 + $0x48]]
        %v634 = vstv %s632
        %v635 = vmul.f32 %v296, %v634
        %637 = vrot.lane.b32.xlu0 %v635, 80
        %v638 = vpop.permute.xlu0 %637
        %v639 = vrot.slane %v638, 1
        %v640 = vsel %vm354, %v638, %v639
        %v642 = vadd.f32 %v631, %v640
        %v643 = vstv %s633
        %v644 = vmul.f32 %v300, %v643
        %646 = vrot.lane.b32.xlu0 %v644, 80
        %v647 = vpop.permute.xlu0 %646
        %v648 = vrot.slane %v647, 1
        %v649 = vsel %vm354, %v647, %v648
        %v651 = vadd.f32 %v642, %v649
        %s652 = sld [smem:[#allocation4 + $0x1e]]
        %s653 = sld [smem:[#allocation4 + $0x4f]]
        %v654 = vstv %s652
        %v655 = vmul.f32 %v369, %v654
        %657 = vrot.lane.b32.xlu0 %v655, 64
        %v658 = vpop.permute.xlu0 %657
        %v659 = vrot.slane %v658, 7
        %v660 = vsel %vm376, %v659, %v658
        %v662 = vadd.f32 %v651, %v660
        %v663 = vstv %s653
        %v664 = vmul.f32 %v380, %v663
        %666 = vrot.lane.b32.xlu0 %v664, 64
        %v667 = vpop.permute.xlu0 %666
        %v668 = vrot.slane %v667, 7
        %v669 = vsel %vm376, %v668, %v667
        %v671 = vadd.f32 %v662, %v669
        %s672 = sld [smem:[#allocation4 + $0x25]]
        %s673 = sld [smem:[#allocation4 + $0x56]]
        %v674 = vstv %s672
        %v675 = vmul.f32 %v369, %v674
        %677 = vrot.lane.b32.xlu0 %v675, 48
        %v678 = vpop.permute.xlu0 %677
        %v679 = vrot.slane %v678, 7
        %v680 = vsel %vm398, %v679, %v678
        %v682 = vadd.f32 %v671, %v680
        %v683 = vstv %s673
        %v684 = vmul.f32 %v380, %v683
        %686 = vrot.lane.b32.xlu0 %v684, 48
        %v687 = vpop.permute.xlu0 %686
        %v688 = vrot.slane %v687, 7
        %v689 = vsel %vm398, %v688, %v687
        %v691 = vadd.f32 %v682, %v689
        %s692 = sld [smem:[#allocation4 + $0x2c]]
        %s693 = sld [smem:[#allocation4 + $0x5d]]
        %v694 = vstv %s692
        %v695 = vmul.f32 %v369, %v694
        %697 = vrot.lane.b32.xlu0 %v695, 32
        %v698 = vpop.permute.xlu0 %697
        %v699 = vrot.slane %v698, 7
        %v700 = vsel %vm419, %v699, %v698
        %v702 = vadd.f32 %v691, %v700
        %v703 = vstv %s693
        %v704 = vmul.f32 %v380, %v703
        %706 = vrot.lane.b32.xlu0 %v704, 32
        %v707 = vpop.permute.xlu0 %706
        %v708 = vrot.slane %v707, 7
        %v709 = vsel %vm419, %v708, %v707
        %v711 = vadd.f32 %v702, %v709
        %vm712 = vcmp.ge.s32.totalorder %v293, 1
        %vm713 = vcmp.lt.s32.totalorder %v293, 17
        %vm714 = vmand %vm712, %vm713
        %716 = vrot.lane.b32.xlu0 %v711, 49
        %v717 = vpop.permute.xlu0 %716
        %v718 = vrot.slane %v717, 1
        %vm719 = vcmask 400384
        %v720 = vsel %vm719, %v717, %v718
        %v722 = vsel %vm714, %v720, 0.0
        %v723 = vadd.f32 %v583, %v722
        %s724 = sld [smem:[#allocation4 + $0x3]]
        %s725 = sld [smem:[#allocation4 + $0x34]]
        %v726 = vstv %s724
        %v727 = vmul.f32 %v296, %v726
        %v728 = vadd.f32 %v727, 0.0
        %v729 = vstv %s725
        %v730 = vmul.f32 %v300, %v729
        %v731 = vadd.f32 %v728, %v730
        %s732 = sld [smem:[#allocation4 + $0xa]]
        %s733 = sld [smem:[#allocation4 + $0x3b]]
        %v734 = vstv %s732
        %v735 = vmul.f32 %v296, %v734
        %737 = vrot.lane.b32.xlu0 %v735, 112
        %v738 = vpop.permute.xlu0 %737
        %v739 = vrot.slane %v738, 1
        %v740 = vsel %vm312, %v738, %v739
        %v742 = vadd.f32 %v731, %v740
        %v743 = vstv %s733
        %v744 = vmul.f32 %v300, %v743
        %746 = vrot.lane.b32.xlu0 %v744, 112
        %v747 = vpop.permute.xlu0 %746
        %v748 = vrot.slane %v747, 1
        %v749 = vsel %vm312, %v747, %v748
        %v751 = vadd.f32 %v742, %v749
        %s752 = sld [smem:[#allocation4 + $0x11]]
        %s753 = sld [smem:[#allocation4 + $0x42]]
        %v754 = vstv %s752
        %v755 = vmul.f32 %v296, %v754
        %757 = vrot.lane.b32.xlu0 %v755, 96
        %v758 = vpop.permute.xlu0 %757
        %v759 = vrot.slane %v758, 1
        %v760 = vsel %vm333, %v758, %v759
        %v762 = vadd.f32 %v751, %v760
        %v763 = vstv %s753
        %v764 = vmul.f32 %v300, %v763
        %766 = vrot.lane.b32.xlu0 %v764, 96
        %v767 = vpop.permute.xlu0 %766
        %v768 = vrot.slane %v767, 1
        %v769 = vsel %vm333, %v767, %v768
        %v771 = vadd.f32 %v762, %v769
        %s772 = sld [smem:[#allocation4 + $0x18]]
        %s773 = sld [smem:[#allocation4 + $0x49]]
        %v774 = vld [vmem:[#allocation2 + $0x1] sm:$0x3]
        %v775 = vstv %s772
        %v776 = vmul.f32 %v774, %v775
        %778 = vrot.lane.b32.xlu0 %v776, 80
        %v779 = vpop.permute.xlu0 %778
        %v780 = vrot.slane %v779, 7
        %v781 = vsel %vm354, %v780, %v779
        %v783 = vadd.f32 %v771, %v781
        %v784 = vld [vmem:[#allocation3 + $0x1] sm:$0x3]
        %v785 = vstv %s773
        %v786 = vmul.f32 %v784, %v785
        %788 = vrot.lane.b32.xlu0 %v786, 80
        %v789 = vpop.permute.xlu0 %788
        %v790 = vrot.slane %v789, 7
        %v791 = vsel %vm354, %v790, %v789
        %v793 = vadd.f32 %v783, %v791
        %s794 = sld [smem:[#allocation4 + $0x1f]]
        %s795 = sld [smem:[#allocation4 + $0x50]]
        %v796 = vstv %s794
        %v797 = vmul.f32 %v369, %v796
        %799 = vrot.lane.b32.xlu0 %v797, 64
        %v800 = vpop.permute.xlu0 %799
        %v801 = vrot.slane %v800, 7
        %v802 = vsel %vm376, %v801, %v800
        %v804 = vadd.f32 %v793, %v802
        %v805 = vstv %s795
        %v806 = vmul.f32 %v380, %v805
        %808 = vrot.lane.b32.xlu0 %v806, 64
        %v809 = vpop.permute.xlu0 %808
        %v810 = vrot.slane %v809, 7
        %v811 = vsel %vm376, %v810, %v809
        %v813 = vadd.f32 %v804, %v811
        %s814 = sld [smem:[#allocation4 + $0x26]]
        %s815 = sld [smem:[#allocation4 + $0x57]]
        %v816 = vstv %s814
        %v817 = vmul.f32 %v369, %v816
        %819 = vrot.lane.b32.xlu0 %v817, 48
        %v820 = vpop.permute.xlu0 %819
        %v821 = vrot.slane %v820, 7
        %v822 = vsel %vm398, %v821, %v820
        %v824 = vadd.f32 %v813, %v822
        %v825 = vstv %s815
        %v826 = vmul.f32 %v380, %v825
        %828 = vrot.lane.b32.xlu0 %v826, 48
        %v829 = vpop.permute.xlu0 %828
        %v830 = vrot.slane %v829, 7
        %v831 = vsel %vm398, %v830, %v829
        %v833 = vadd.f32 %v824, %v831
        %s834 = sld [smem:[#allocation4 + $0x2d]]
        %s835 = sld [smem:[#allocation4 + $0x5e]]
        %v836 = vstv %s834
        %v837 = vmul.f32 %v369, %v836
        %839 = vrot.lane.b32.xlu0 %v837, 32
        %v840 = vpop.permute.xlu0 %839
        %v841 = vrot.slane %v840, 7
        %v842 = vsel %vm419, %v841, %v840
        %v844 = vadd.f32 %v833, %v842
        %v845 = vstv %s835
        %v846 = vmul.f32 %v380, %v845
        %848 = vrot.lane.b32.xlu0 %v846, 32
        %v849 = vpop.permute.xlu0 %848
        %v850 = vrot.slane %v849, 7
        %v851 = vsel %vm419, %v850, %v849
        %v853 = vadd.f32 %v844, %v851
        %855 = vrot.lane.b32.xlu0 %v853, 48
        %v856 = vpop.permute.xlu0 %855
        %v857 = vrot.slane %v856, 1
        %v858 = vsel %vm398, %v856, %v857
        %v860 = vadd.f32 %v723, %v858
        %s861 = sld [smem:[#allocation4 + $0x4]]
        %s862 = sld [smem:[#allocation4 + $0x35]]
        %v863 = vstv %s861
        %v864 = vmul.f32 %v296, %v863
        %v865 = vadd.f32 %v864, 0.0
        %v866 = vstv %s862
        %v867 = vmul.f32 %v300, %v866
        %v868 = vadd.f32 %v865, %v867
        %s869 = sld [smem:[#allocation4 + $0xb]]
        %s870 = sld [smem:[#allocation4 + $0x3c]]
        %v871 = vstv %s869
        %v872 = vmul.f32 %v296, %v871
        %874 = vrot.lane.b32.xlu0 %v872, 112
        %v875 = vpop.permute.xlu0 %874
        %v876 = vrot.slane %v875, 1
        %v877 = vsel %vm312, %v875, %v876
        %v879 = vadd.f32 %v868, %v877
        %v880 = vstv %s870
        %v881 = vmul.f32 %v300, %v880
        %883 = vrot.lane.b32.xlu0 %v881, 112
        %v884 = vpop.permute.xlu0 %883
        %v885 = vrot.slane %v884, 1
        %v886 = vsel %vm312, %v884, %v885
        %v888 = vadd.f32 %v879, %v886
        %s889 = sld [smem:[#allocation4 + $0x12]]
        %s890 = sld [smem:[#allocation4 + $0x43]]
        %v891 = vstv %s889
        %v892 = vmul.f32 %v296, %v891
        %894 = vrot.lane.b32.xlu0 %v892, 96
        %v895 = vpop.permute.xlu0 %894
        %v896 = vrot.slane %v895, 1
        %v897 = vsel %vm333, %v895, %v896
        %v899 = vadd.f32 %v888, %v897
        %v900 = vstv %s890
        %v901 = vmul.f32 %v300, %v900
        %903 = vrot.lane.b32.xlu0 %v901, 96
        %v904 = vpop.permute.xlu0 %903
        %v905 = vrot.slane %v904, 1
        %v906 = vsel %vm333, %v904, %v905
        %v908 = vadd.f32 %v899, %v906
        %s909 = sld [smem:[#allocation4 + $0x19]]
        %s910 = sld [smem:[#allocation4 + $0x4a]]
        %v911 = vstv %s909
        %v912 = vmul.f32 %v369, %v911
        %914 = vrot.lane.b32.xlu0 %v912, 80
        %v915 = vpop.permute.xlu0 %914
        %v916 = vrot.slane %v915, 7
        %v917 = vsel %vm354, %v916, %v915
        %v919 = vadd.f32 %v908, %v917
        %v920 = vstv %s910
        %v921 = vmul.f32 %v380, %v920
        %923 = vrot.lane.b32.xlu0 %v921, 80
        %v924 = vpop.permute.xlu0 %923
        %v925 = vrot.slane %v924, 7
        %v926 = vsel %vm354, %v925, %v924
        %v928 = vadd.f32 %v919, %v926
        %s929 = sld [smem:[#allocation4 + $0x20]]
        %s930 = sld [smem:[#allocation4 + $0x51]]
        %v931 = vstv %s929
        %v932 = vmul.f32 %v369, %v931
        %934 = vrot.lane.b32.xlu0 %v932, 64
        %v935 = vpop.permute.xlu0 %934
        %v936 = vrot.slane %v935, 7
        %v937 = vsel %vm376, %v936, %v935
        %v939 = vadd.f32 %v928, %v937
        %v940 = vstv %s930
        %v941 = vmul.f32 %v380, %v940
        %943 = vrot.lane.b32.xlu0 %v941, 64
        %v944 = vpop.permute.xlu0 %943
        %v945 = vrot.slane %v944, 7
        %v946 = vsel %vm376, %v945, %v944
        %v948 = vadd.f32 %v939, %v946
        %s949 = sld [smem:[#allocation4 + $0x27]]
        %s950 = sld [smem:[#allocation4 + $0x58]]
        %v951 = vstv %s949
        %v952 = vmul.f32 %v369, %v951
        %954 = vrot.lane.b32.xlu0 %v952, 48
        %v955 = vpop.permute.xlu0 %954
        %v956 = vrot.slane %v955, 7
        %v957 = vsel %vm398, %v956, %v955
        %v959 = vadd.f32 %v948, %v957
        %v960 = vstv %s950
        %v961 = vmul.f32 %v380, %v960
        %963 = vrot.lane.b32.xlu0 %v961, 48
        %v964 = vpop.permute.xlu0 %963
        %v965 = vrot.slane %v964, 7
        %v966 = vsel %vm398, %v965, %v964
        %v968 = vadd.f32 %v959, %v966
        %s969 = sld [smem:[#allocation4 + $0x2e]]
        %s970 = sld [smem:[#allocation4 + $0x5f]]
        %v971 = vstv %s969
        %v972 = vmul.f32 %v369, %v971
        %974 = vrot.lane.b32.xlu0 %v972, 32
        %v975 = vpop.permute.xlu0 %974
        %v976 = vrot.slane %v975, 7
        %v977 = vsel %vm419, %v976, %v975
        %v979 = vadd.f32 %v968, %v977
        %v980 = vstv %s970
        %v981 = vmul.f32 %v380, %v980
        %983 = vrot.lane.b32.xlu0 %v981, 32
        %v984 = vpop.permute.xlu0 %983
        %v985 = vrot.slane %v984, 7
        %v986 = vsel %vm419, %v985, %v984
        %v988 = vadd.f32 %v979, %v986
        %vm989 = vcmp.ge.s32.totalorder %v293, 4294967295
        %vm990 = vcmp.lt.s32.totalorder %v293, 15
        %vm991 = vmand %vm989, %vm990
        %993 = vrot.lane.b32.xlu0 %v988, 47
        %v994 = vpop.permute.xlu0 %993
        %v995 = vrot.slane %v994, 1
        %vm996 = vcmask 384000
        %v997 = vsel %vm996, %v994, %v995
        %v999 = vsel %vm991, %v997, 0.0
        %v1000 = vadd.f32 %v860, %v999
        %s1001 = sld [smem:[#allocation4 + $0x5]]
        %s1002 = sld [smem:[#allocation4 + $0x36]]
        %v1003 = vstv %s1001
        %v1004 = vmul.f32 %v296, %v1003
        %v1005 = vadd.f32 %v1004, 0.0
        %v1006 = vstv %s1002
        %v1007 = vmul.f32 %v300, %v1006
        %v1008 = vadd.f32 %v1005, %v1007
        %s1009 = sld [smem:[#allocation4 + $0xc]]
        %s1010 = sld [smem:[#allocation4 + $0x3d]]
        %v1011 = vstv %s1009
        %v1012 = vmul.f32 %v296, %v1011
        %1014 = vrot.lane.b32.xlu0 %v1012, 112
        %v1015 = vpop.permute.xlu0 %1014
        %v1016 = vrot.slane %v1015, 1
        %v1017 = vsel %vm312, %v1015, %v1016
        %v1019 = vadd.f32 %v1008, %v1017
        %v1020 = vstv %s1010
        %v1021 = vmul.f32 %v300, %v1020
        %1023 = vrot.lane.b32.xlu0 %v1021, 112
        %v1024 = vpop.permute.xlu0 %1023
        %v1025 = vrot.slane %v1024, 1
        %v1026 = vsel %vm312, %v1024, %v1025
        %v1028 = vadd.f32 %v1019, %v1026
        %s1029 = sld [smem:[#allocation4 + $0x13]]
        %s1030 = sld [smem:[#allocation4 + $0x44]]
        %v1031 = vstv %s1029
        %v1032 = vmul.f32 %v296, %v1031
        %1034 = vrot.lane.b32.xlu0 %v1032, 96
        %v1035 = vpop.permute.xlu0 %1034
        %v1036 = vrot.slane %v1035, 1
        %v1037 = vsel %vm333, %v1035, %v1036
        %v1039 = vadd.f32 %v1028, %v1037
        %v1040 = vstv %s1030
        %v1041 = vmul.f32 %v300, %v1040
        %1043 = vrot.lane.b32.xlu0 %v1041, 96
        %v1044 = vpop.permute.xlu0 %1043
        %v1045 = vrot.slane %v1044, 1
        %v1046 = vsel %vm333, %v1044, %v1045
        %v1048 = vadd.f32 %v1039, %v1046
        %s1049 = sld [smem:[#allocation4 + $0x1a]]
        %s1050 = sld [smem:[#allocation4 + $0x4b]]
        %v1051 = vstv %s1049
        %v1052 = vmul.f32 %v369, %v1051
        %1054 = vrot.lane.b32.xlu0 %v1052, 80
        %v1055 = vpop.permute.xlu0 %1054
        %v1056 = vrot.slane %v1055, 7
        %v1057 = vsel %vm354, %v1056, %v1055
        %v1059 = vadd.f32 %v1048, %v1057
        %v1060 = vstv %s1050
        %v1061 = vmul.f32 %v380, %v1060
        %1063 = vrot.lane.b32.xlu0 %v1061, 80
        %v1064 = vpop.permute.xlu0 %1063
        %v1065 = vrot.slane %v1064, 7
        %v1066 = vsel %vm354, %v1065, %v1064
        %v1068 = vadd.f32 %v1059, %v1066
        %s1069 = sld [smem:[#allocation4 + $0x21]]
        %s1070 = sld [smem:[#allocation4 + $0x52]]
        %v1071 = vstv %s1069
        %v1072 = vmul.f32 %v369, %v1071
        %1074 = vrot.lane.b32.xlu0 %v1072, 64
        %v1075 = vpop.permute.xlu0 %1074
        %v1076 = vrot.slane %v1075, 7
        %v1077 = vsel %vm376, %v1076, %v1075
        %v1079 = vadd.f32 %v1068, %v1077
        %v1080 = vstv %s1070
        %v1081 = vmul.f32 %v380, %v1080
        %1083 = vrot.lane.b32.xlu0 %v1081, 64
        %v1084 = vpop.permute.xlu0 %1083
        %v1085 = vrot.slane %v1084, 7
        %v1086 = vsel %vm376, %v1085, %v1084
        %v1088 = vadd.f32 %v1079, %v1086
        %s1089 = sld [smem:[#allocation4 + $0x28]]
        %s1090 = sld [smem:[#allocation4 + $0x59]]
        %v1091 = vstv %s1089
        %v1092 = vmul.f32 %v369, %v1091
        %1094 = vrot.lane.b32.xlu0 %v1092, 48
        %v1095 = vpop.permute.xlu0 %1094
        %v1096 = vrot.slane %v1095, 7
        %v1097 = vsel %vm398, %v1096, %v1095
        %v1099 = vadd.f32 %v1088, %v1097
        %v1100 = vstv %s1090
        %v1101 = vmul.f32 %v380, %v1100
        %1103 = vrot.lane.b32.xlu0 %v1101, 48
        %v1104 = vpop.permute.xlu0 %1103
        %v1105 = vrot.slane %v1104, 7
        %v1106 = vsel %vm398, %v1105, %v1104
        %v1108 = vadd.f32 %v1099, %v1106
        %s1109 = sld [smem:[#allocation4 + $0x2f]]
        %s1110 = sld [smem:[#allocation4 + $0x60]]
        %v1111 = vstv %s1109
        %v1112 = vmul.f32 %v369, %v1111
        %1114 = vrot.lane.b32.xlu0 %v1112, 32
        %v1115 = vpop.permute.xlu0 %1114
        %v1116 = vrot.slane %v1115, 7
        %v1117 = vsel %vm419, %v1116, %v1115
        %v1119 = vadd.f32 %v1108, %v1117
        %v1120 = vstv %s1110
        %v1121 = vmul.f32 %v380, %v1120
        %1123 = vrot.lane.b32.xlu0 %v1121, 32
        %v1124 = vpop.permute.xlu0 %1123
        %v1125 = vrot.slane %v1124, 7
        %v1126 = vsel %vm419, %v1125, %v1124
        %v1128 = vadd.f32 %v1119, %v1126
        %vm1129 = vcmp.ge.s32.totalorder %v293, 4294967294
        %vm1130 = vcmp.lt.s32.totalorder %v293, 14
        %vm1131 = vmand %vm1129, %vm1130
        %1133 = vrot.lane.b32.xlu0 %v1128, 46
        %v1134 = vpop.permute.xlu0 %1133
        %v1135 = vrot.slane %v1134, 1
        %vm1136 = vcmask 375808
        %v1137 = vsel %vm1136, %v1134, %v1135
        %v1139 = vsel %vm1131, %v1137, 0.0
        %v1140 = vadd.f32 %v1000, %v1139
        %s1141 = sld [smem:[#allocation4 + $0x6]]
        %s1142 = sld [smem:[#allocation4 + $0x37]]
        %v1143 = vstv %s1141
        %v1144 = vmul.f32 %v296, %v1143
        %v1145 = vadd.f32 %v1144, 0.0
        %v1146 = vstv %s1142
        %v1147 = vmul.f32 %v300, %v1146
        %v1148 = vadd.f32 %v1145, %v1147
        %s1149 = sld [smem:[#allocation4 + $0xd]]
        %s1150 = sld [smem:[#allocation4 + $0x3e]]
        %v1151 = vstv %s1149
        %v1152 = vmul.f32 %v296, %v1151
        %1154 = vrot.lane.b32.xlu0 %v1152, 112
        %v1155 = vpop.permute.xlu0 %1154
        %v1156 = vrot.slane %v1155, 1
        %v1157 = vsel %vm312, %v1155, %v1156
        %v1159 = vadd.f32 %v1148, %v1157
        %v1160 = vstv %s1150
        %v1161 = vmul.f32 %v300, %v1160
        %1163 = vrot.lane.b32.xlu0 %v1161, 112
        %v1164 = vpop.permute.xlu0 %1163
        %v1165 = vrot.slane %v1164, 1
        %v1166 = vsel %vm312, %v1164, %v1165
        %v1168 = vadd.f32 %v1159, %v1166
        %s1169 = sld [smem:[#allocation4 + $0x14]]
        %s1170 = sld [smem:[#allocation4 + $0x45]]
        %v1171 = vstv %s1169
        %v1172 = vmul.f32 %v296, %v1171
        %1174 = vrot.lane.b32.xlu0 %v1172, 96
        %v1175 = vpop.permute.xlu0 %1174
        %v1176 = vrot.slane %v1175, 1
        %v1177 = vsel %vm333, %v1175, %v1176
        %v1179 = vadd.f32 %v1168, %v1177
        %v1180 = vstv %s1170
        %v1181 = vmul.f32 %v300, %v1180
        %1183 = vrot.lane.b32.xlu0 %v1181, 96
        %v1184 = vpop.permute.xlu0 %1183
        %v1185 = vrot.slane %v1184, 1
        %v1186 = vsel %vm333, %v1184, %v1185
        %v1188 = vadd.f32 %v1179, %v1186
        %s1189 = sld [smem:[#allocation4 + $0x1b]]
        %s1190 = sld [smem:[#allocation4 + $0x4c]]
        %v1191 = vstv %s1189
        %v1192 = vmul.f32 %v369, %v1191
        %1194 = vrot.lane.b32.xlu0 %v1192, 80
        %v1195 = vpop.permute.xlu0 %1194
        %v1196 = vrot.slane %v1195, 7
        %v1197 = vsel %vm354, %v1196, %v1195
        %v1199 = vadd.f32 %v1188, %v1197
        %v1200 = vstv %s1190
        %v1201 = vmul.f32 %v380, %v1200
        %1203 = vrot.lane.b32.xlu0 %v1201, 80
        %v1204 = vpop.permute.xlu0 %1203
        %v1205 = vrot.slane %v1204, 7
        %v1206 = vsel %vm354, %v1205, %v1204
        %v1208 = vadd.f32 %v1199, %v1206
        %s1209 = sld [smem:[#allocation4 + $0x22]]
        %s1210 = sld [smem:[#allocation4 + $0x53]]
        %v1211 = vstv %s1209
        %v1212 = vmul.f32 %v369, %v1211
        %1214 = vrot.lane.b32.xlu0 %v1212, 64
        %v1215 = vpop.permute.xlu0 %1214
        %v1216 = vrot.slane %v1215, 7
        %v1217 = vsel %vm376, %v1216, %v1215
        %v1219 = vadd.f32 %v1208, %v1217
        %v1220 = vstv %s1210
        %v1221 = vmul.f32 %v380, %v1220
        %1223 = vrot.lane.b32.xlu0 %v1221, 64
        %v1224 = vpop.permute.xlu0 %1223
        %v1225 = vrot.slane %v1224, 7
        %v1226 = vsel %vm376, %v1225, %v1224
        %v1228 = vadd.f32 %v1219, %v1226
        %s1229 = sld [smem:[#allocation4 + $0x29]]
        %s1230 = sld [smem:[#allocation4 + $0x5a]]
        %v1231 = vstv %s1229
        %v1232 = vmul.f32 %v369, %v1231
        %1234 = vrot.lane.b32.xlu0 %v1232, 48
        %v1235 = vpop.permute.xlu0 %1234
        %v1236 = vrot.slane %v1235, 7
        %v1237 = vsel %vm398, %v1236, %v1235
        %v1239 = vadd.f32 %v1228, %v1237
        %v1240 = vstv %s1230
        %v1241 = vmul.f32 %v380, %v1240
        %1243 = vrot.lane.b32.xlu0 %v1241, 48
        %v1244 = vpop.permute.xlu0 %1243
        %v1245 = vrot.slane %v1244, 7
        %v1246 = vsel %vm398, %v1245, %v1244
        %v1248 = vadd.f32 %v1239, %v1246
        %s1249 = sld [smem:[#allocation4 + $0x30]]
        %s1250 = sld [smem:[#allocation4 + $0x61]]
        %v1251 = vstv %s1249
        %v1252 = vmul.f32 %v369, %v1251
        %1254 = vrot.lane.b32.xlu0 %v1252, 32
        %v1255 = vpop.permute.xlu0 %1254
        %v1256 = vrot.slane %v1255, 7
        %v1257 = vsel %vm419, %v1256, %v1255
        %v1259 = vadd.f32 %v1248, %v1257
        %v1260 = vstv %s1250
        %v1261 = vmul.f32 %v380, %v1260
        %1263 = vrot.lane.b32.xlu0 %v1261, 32
        %v1264 = vpop.permute.xlu0 %1263
        %v1265 = vrot.slane %v1264, 7
        %v1266 = vsel %vm419, %v1265, %v1264
        %v1268 = vadd.f32 %v1259, %v1266
        %vm1269 = vcmp.ge.s32.totalorder %v293, 4294967293
        %vm1270 = vcmp.lt.s32.totalorder %v293, 13
        %vm1271 = vmand %vm1269, %vm1270
        %1273 = vrot.lane.b32.xlu0 %v1268, 45
        %v1274 = vpop.permute.xlu0 %1273
        %v1275 = vrot.slane %v1274, 1
        %vm1276 = vcmask 367616
        %v1277 = vsel %vm1276, %v1274, %v1275
        %v1279 = vsel %vm1271, %v1277, 0.0
        %v1280 = vadd.f32 %v1140, %v1279
        %v1281 = vxor.u32 %v1280, 2147483648
        %v1282 = vmul.f32 %v1281, 1.442695
        %v1283 = vpow.pop %v1282
        %v1284 = vadd.f32 %v1283, 1.0
        %v1285 = vrcp.pop %v1284
        %v1286 = vmul.f32 %v1284, %v1285
        %v1287 = vsub.f32 1.0, %v1286
        %v1288 = vmul.f32 %v1285, %v1287
        %v1289 = vadd.f32 %v1285, %v1288
        %vm1290 = vweird.f32 %v1284
        %vm1291 = vweird.f32 %v1285
        %vm1292 = vmor %vm1290, %vm1291
        %v1293 = vsel %vm1292, %v1285, %v1289
        %v1294 = vand.u32 2147483647, %v1284
        %vm1295 = vcmp.eq.f32.partialorder %v1294, 8.507059e+37
        %v1296 = vand.u32 %v1284, 2147483648
        %v1297 = vor.u32 1.1754944e-38, %v1296
        %v1298 = vsel %vm1295, %v1297, %v1293
        %v1299 = vmul.f32 1.0, %v1298
        %v1301 = vperm.slane %v1299, 0
        %v1302 = vperm.slane %v1299, 1
        %v1303 = vrot.slane %v1302, 4
        %v1304 = vsel %vm225, %v1301, %v1303
        %v1306 = vmul.f32 %v218, %v1304
        %1307 = vst [vmem:[%s217] sm:$0xff] %v1306
        %s1308 = sand.u32 %s98, 1
        %s1309 = scalar_lea.sflag [#allocation6], %s1308
        %s1310 = sand.u32 %s98, 1
        %s1311 = smul.addr %s1310, 8
        %s1312 = scalar_lea.vmem [#allocation11], %s1311
        // Predicated region
        $region45: #{tpu_custom_call.1} parent=31 // pred_check
          %p1313 = pneg %p108
        $region46: #{tpu_custom_call.1} parent=31 // pred_check_branch
          %1315 = sbr.rel (%p1313) target = $region48
        $region47: #{tpu_custom_call.1} parent=31 // pred_region
          %1317 = vsyncadd %s1309, 0
          %s1318 = smul.addr %s22, 2
          %s1319 = smul.addr %s1318, 4
          %s1320 = scalar_lea.hbm %s3, %s1319
          %s1322 = sshll.u32 %s1312, 4
          %s1323 = int_to_ptr.vmem [resolvable:$true] %s1322
          %s1324 = sshll.u32 %s1320, 4
          %s1325 = int_to_ptr.hbm [resolvable:$true] %s1324
          %1327 = dma.vmem_to_hbm [thread:$0]  %s1323, 128, %s1325, %s1309
        $region48: #{tpu_custom_call.1} parent=31 // pred_fallthru
          _
      $region32: #{tpu_custom_call.1} parent=5 // pred_fallthru
        _
      %p1328 = scmp.le.s32.totalorder 2, %s17
      // Predicated region
      $region49: #{tpu_custom_call.1} parent=5 // pred_check
        %p1329 = pneg %p1328
      $region50: #{tpu_custom_call.1} parent=5 // pred_check_branch
        %1331 = sbr.rel (%p1329) target = $region52
      $region51: #{tpu_custom_call.1} parent=5 // pred_region
        %s1332 = ssub.s32 %s17, 2
        // Predicated region
        $region53: #{tpu_custom_call.1} parent=51 // pred_check
          %p1333 = pneg %p114
        $region54: #{tpu_custom_call.1} parent=51 // pred_check_branch
          %1335 = sbr.rel (%p1333) target = $region56
        $region55: #{tpu_custom_call.1} parent=51 // pred_region
          %s1336 = sand.u32 %s99, 1
          %s1337 = scalar_lea.sflag [#allocation6], %s1336
          %s1338 = sand.u32 %s99, 1
          %s1339 = smul.addr %s1338, 8
          %s1340 = scalar_lea.vmem [#allocation11], %s1339
          %1342 = dma.done %s1337, 128
        $region56: #{tpu_custom_call.1} parent=51 // pred_fallthru
          _
      $region52: #{tpu_custom_call.1} parent=5 // pred_fallthru
        _
    $region6: #{tpu_custom_call.1} parent=1 // loop_footer
      %s21 = sadd.s32 1, %s17
    $region7: #{tpu_custom_call.1} parent=1 // loop_footer_branch
      %16 = sbr.rel target = $region3
    $region8: #{tpu_custom_call.1} parent=1 // loop_exit
      _
    %1343 = vsyncpa [#allocation5], 1
    %s1344 = scalar_lea.sflag [#allocation5], 1
    %1345 = vsyncpa %s1344, 1
    %1346 = vsyncpa [#allocation10], 1
    %s1347 = scalar_lea.sflag [#allocation10], 1
    %1348 = vsyncpa %s1347, 1
    %1349 = vsyncpa [#allocation6], 1
    %s1350 = scalar_lea.sflag [#allocation6], 1
    %1351 = vsyncpa %s1350, 1
    %1352 = vsyncpa [#allocation7], 1
    %s1353 = scalar_lea.sflag [#allocation7], 1
    %1354 = vsyncpa %s1353, 1

</llo_original>
